<compile_context>
chip_gen: v7x
topology: tpu7x:2x2x1
jax: 0.10.0
libtpu: 0.0.40
codegen_flags: <defaults>
</compile_context>

<pallas_src>
import jax
import jax.numpy as jnp
from jax.experimental import pallas as pl
from jax.experimental.pallas import tpu as pltpu

KERNEL_SIZE = 8     # Conv1d kernel size
POOL = 4            # MaxPool1d kernel == stride
PADW = 128          # per-tile lane padding (>= the 2-column window overlap, keeps 128-alignment)


def _round_up(x, m):
    return (x + m - 1) // m * m


def _cdiv(a, b):
    return -(-a // b)


def encoder2_kernel(w_ref, b_ref, xw_ref, o_ref):
    """Fused Conv1d(k=8,s=1) + bias + ReLU + MaxPool1d(4,4) for one (sample, length-tile) block.

    w_ref  : (K, C2, C1)    bf16  conv weight, one (C2, C1) tap per kernel position
    b_ref  : (C2, 1)        f32   conv bias
    xw_ref : (POOL, C1, Tm) bf16  pool-phase slabs of the raw input window:
                                  xw[q, c1, i] = x[c1, 4*(tile_start + i) + q],  Tm = Tp + PADW
    o_ref  : (C2, Tp)       f32   pooled output columns (lane-dense)
    """
    tp = o_ref.shape[-1]

    # Phase slabs, loaded once per grid step (resident in VMEM/vregs).
    xq = [xw_ref[q] for q in range(POOL)]
    # The 8 taps of the 4 pool phases only ever need 11 distinct views:
    # conv position c = 4j + p, x index c + k = 4*(j + (p+k)//4) + (p+k)%4
    # -> phase (p+k)%4 with a static lane shift of (p+k)//4 in {0,1,2}.
    xs = [xq[o % POOL][:, o // POOL: o // POOL + tp]
          for o in range(POOL + KERNEL_SIZE - 1)]
    wk = [w_ref[k] for k in range(KERNEL_SIZE)]          # 8 x (C2, C1) bf16

    pooled = None
    for p in range(POOL):                                # one accumulator per pool phase
        acc = jnp.dot(wk[0], xs[p], preferred_element_type=jnp.float32)
        for k in range(1, KERNEL_SIZE):
            acc = acc + jnp.dot(wk[k], xs[p + k], preferred_element_type=jnp.float32)
        pooled = acc if pooled is None else jnp.maximum(pooled, acc)

    # Bias is shared across the pool window and ReLU is monotone -> both commute with max.
    o_ref[...] = jnp.maximum(pooled + b_ref[...], 0.0)
    # TODO(synk): Dropout(0.5) omitted (identity / eval mode); PyTorch's training-mode RNG
    # stream cannot be reproduced in-kernel.


def encoder2_forward(x, weight, bias, *, lane_tile=2048):
    """Encoder2.forward in eval mode (Dropout == identity).

    x: (N, C1, L) f32 ; weight: (C2, C1, K) (PyTorch Conv1d layout) ; bias: (C2,)
    Returns (N, C2, (L - K + 1) // 4) f32.

    Precision contract: conv matmul operands are bf16, accumulation and epilogue are f32.
    """
    N, C1, L = x.shape
    C2, wc1, K = weight.shape
    assert K == KERNEL_SIZE and wc1 == C1
    Lc = L - K + 1
    Lp = Lc // POOL
    assert Lp >= 1, "input too short for Conv1d(k=8) + MaxPool1d(4)"

    # Pooled-column tile per grid step (output lane width), multiple of 128.
    Tp = min(_round_up(max(lane_tile, 128), 128), _round_up(Lp, 128))
    num_t = _cdiv(Lp, Tp)
    # v7x megacore: guarantee >= 2 parallel grid blocks whenever the problem allows it.
    if N * num_t == 1 and Lp > 128:
        Tp = _round_up(_cdiv(Lp, 2), 128)
        num_t = _cdiv(Lp, Tp)
    NB = N * num_t
    Tm = Tp + PADW
    Mneed = num_t * Tp + PADW               # phase-axis length needed (incl. window overlap)

    # ---------- light bf16 plumbing on the RAW input (no 8x im2col expansion) ----------
    xb = x.astype(jnp.bfloat16)                                    # cast first: halves all passes
    xpad = jnp.pad(xb, ((0, 0), (0, 0), (0, POOL * Mneed - L)))
    # phase split: xp[n, q, c1, m] = x[n, c1, 4*m + q]
    xp = jnp.transpose(xpad.reshape(N, C1, Mneed, POOL), (0, 3, 1, 2))
    # per-grid-step windows: consecutive tiles overlap by 2 columns (padded out to PADW)
    xw = jnp.stack([xp[:, :, :, t * Tp: t * Tp + Tm] for t in range(num_t)], axis=1)
    xw = xw.reshape(NB, POOL, C1, Tm)

    wk = jnp.transpose(weight, (2, 0, 1)).astype(jnp.bfloat16)     # (K, C2, C1)
    b2 = bias.reshape(C2, 1).astype(jnp.float32)

    # Per-step VMEM (double-buffered): 2*POOL*C1*Tm*2 + 2*C2*Tp*4 bytes + tiny weight/bias
    # -- far below the 32 MiB scoped default on v5e/v6e/v7x for any sane lane_tile, so no
    # vmem_limit_bytes override is needed.
    out = pl.pallas_call(
        encoder2_kernel,
        out_shape=jax.ShapeDtypeStruct((NB, C2, Tp), jnp.float32),
        grid_spec=pltpu.PrefetchScalarGridSpec(
            num_scalar_prefetch=0,
            grid=(NB,),
            in_specs=[
                pl.BlockSpec((K, C2, C1), lambda b: (0, 0, 0)),              # weight (resident)
                pl.BlockSpec((C2, 1), lambda b: (0, 0)),                     # bias   (resident)
                pl.BlockSpec((None, POOL, C1, Tm), lambda b: (b, 0, 0, 0)),  # input window tile
            ],
            out_specs=pl.BlockSpec((None, C2, Tp), lambda b: (b, 0, 0)),
        ),
        compiler_params=pltpu.CompilerParams(
            dimension_semantics=("parallel",)),
    )(wk, b2, xw)

    # (N*num_t, C2, Tp) -> (N, C2, Lp)   (layout plumbing on the small output, not compute)
    out = out.reshape(N, num_t, C2, Tp).transpose(0, 2, 1, 3).reshape(N, C2, num_t * Tp)
    return out[:, :, :Lp]


def encoder2_ref(x, weight, bias):
    """Pure-JAX reference (eval mode: dropout = identity), bf16 matmul operands / f32 accumulate."""
    N, C1, L = x.shape
    C2, _, K = weight.shape
    Lc = L - K + 1
    xb = x.astype(jnp.bfloat16)
    wb = weight.astype(jnp.bfloat16)
    out = jnp.zeros((N, C2, Lc), jnp.float32)
    for k in range(K):
        out = out + jnp.einsum('oc,ncl->nol', wb[:, :, k], xb[:, :, k:k + Lc],
                               preferred_element_type=jnp.float32)
    out = out + bias.astype(jnp.float32)[None, :, None]
    out = jnp.maximum(out, 0.0)
    Lp = Lc // POOL
    out = out[:, :, :Lp * POOL].reshape(N, C2, Lp, POOL)
    return jnp.max(out, axis=-1)


if __name__ == "__main__":
    key = jax.random.PRNGKey(0)
    kx, kw, kb, kx2, kx3 = jax.random.split(key, 5)

    C1, C2 = 4, 8
    fan_in = C1 * KERNEL_SIZE
    bound = 1.0 / (fan_in ** 0.5)            # PyTorch-style uniform init bound
    weight = jax.random.uniform(kw, (C2, C1, KERNEL_SIZE), jnp.float32, -bound, bound)
    bias = jax.random.uniform(kb, (C2,), jnp.float32, -bound, bound)

    # 1) Multi-sample case: 8 parallel grid blocks, one length-tile per sample.
    N, L = 8, 135                            # Lc = 128, Lp = 32
    x = jax.random.normal(kx, (N, C1, L), dtype=jnp.float32)
    out = jax.block_until_ready(encoder2_forward(x, weight, bias))
    ref = encoder2_ref(x, weight, bias)
    assert out.shape == (N, C2, (L - KERNEL_SIZE + 1) // POOL)
    assert jnp.allclose(out, ref, atol=1e-4, rtol=1e-4), "mismatch vs reference (case 1)"

    # 2) Tiny / heavily padded case (Lp = 8 << 128-lane tile).
    N2, L2 = 2, 39
    x2 = jax.random.normal(kx2, (N2, C1, L2), dtype=jnp.float32)
    out2 = jax.block_until_ready(encoder2_forward(x2, weight, bias))
    ref2 = encoder2_ref(x2, weight, bias)
    assert out2.shape == (N2, C2, (L2 - KERNEL_SIZE + 1) // POOL)
    assert jnp.allclose(out2, ref2, atol=1e-4, rtol=1e-4), "mismatch vs reference (case 2)"

    # 3) Single long sample: exercises the >=2-block split (v7x megacore path),
    #    multiple length tiles per sample and tail padding.
    N3, L3 = 1, 1207                         # Lc = 1200, Lp = 300 -> 2 tiles of Tp = 256
    x3 = jax.random.normal(kx3, (N3, C1, L3), dtype=jnp.float32)
    out3 = jax.block_until_ready(encoder2_forward(x3, weight, bias))
    ref3 = encoder2_ref(x3, weight, bias)
    assert out3.shape == (N3, C2, (L3 - KERNEL_SIZE + 1) // POOL)
    assert jnp.allclose(out3, ref3, atol=1e-4, rtol=1e-4), "mismatch vs reference (case 3)"

    print("KERNEL_OK")
</pallas_src>

<mosaic_0001>
module attributes {stable_mosaic.version = 11 : i64} {
  func.func @encoder2_kernel(%arg0: i32, %arg1: memref<8x8x4xbf16, #tpu.memory_space<vmem>>, %arg2: memref<8x1xf32, #tpu.memory_space<vmem>>, %arg3: memref<1x4x4x256xbf16, #tpu.memory_space<vmem>>, %arg4: memref<1x8x128xf32, #tpu.memory_space<vmem>>) attributes {dimension_semantics = [#tpu.dimension_semantics<parallel>], iteration_bounds = array<i64: 8>, scalar_prefetch = 0 : i64, scratch_operands = 0 : i64, tpu.core_type = #tpu.core_type<tc>, window_params = [{pipeline_mode = #tpu.pipeline_mode<synchronous>, transform_indices = @transform_0, window_bounds = array<i64: 8, 8, 4>}, {pipeline_mode = #tpu.pipeline_mode<synchronous>, transform_indices = @transform_1, window_bounds = array<i64: 8, 1>}, {transform_indices = @transform_2, window_bounds = array<i64: 1, 4, 4, 256>}, {transform_indices = @transform_3, window_bounds = array<i64: 1, 8, 128>}]} {
    %c0 = arith.constant 0 : index
    %c0_0 = arith.constant 0 : index
    %c0_1 = arith.constant 0 : index
    %c0_2 = arith.constant 0 : index
    %0 = vector.load %arg3[%c0, %c0_0, %c0_1, %c0_2] : memref<1x4x4x256xbf16, #tpu.memory_space<vmem>>, vector<1x1x4x256xbf16>
    %1 = vector.shape_cast %0 : vector<1x1x4x256xbf16> to vector<4x256xbf16>
    %c0_3 = arith.constant 0 : index
    %c1 = arith.constant 1 : index
    %c0_4 = arith.constant 0 : index
    %c0_5 = arith.constant 0 : index
    %2 = vector.load %arg3[%c0_3, %c1, %c0_4, %c0_5] : memref<1x4x4x256xbf16, #tpu.memory_space<vmem>>, vector<1x1x4x256xbf16>
    %3 = vector.shape_cast %2 : vector<1x1x4x256xbf16> to vector<4x256xbf16>
    %c0_6 = arith.constant 0 : index
    %c2 = arith.constant 2 : index
    %c0_7 = arith.constant 0 : index
    %c0_8 = arith.constant 0 : index
    %4 = vector.load %arg3[%c0_6, %c2, %c0_7, %c0_8] : memref<1x4x4x256xbf16, #tpu.memory_space<vmem>>, vector<1x1x4x256xbf16>
    %5 = vector.shape_cast %4 : vector<1x1x4x256xbf16> to vector<4x256xbf16>
    %c0_9 = arith.constant 0 : index
    %c3 = arith.constant 3 : index
    %c0_10 = arith.constant 0 : index
    %c0_11 = arith.constant 0 : index
    %6 = vector.load %arg3[%c0_9, %c3, %c0_10, %c0_11] : memref<1x4x4x256xbf16, #tpu.memory_space<vmem>>, vector<1x1x4x256xbf16>
    %7 = vector.shape_cast %6 : vector<1x1x4x256xbf16> to vector<4x256xbf16>
    %8 = vector.extract_strided_slice %1 {offsets = [0, 0], sizes = [4, 128], strides = [1, 1]} : vector<4x256xbf16> to vector<4x128xbf16>
    %9 = vector.extract_strided_slice %3 {offsets = [0, 0], sizes = [4, 128], strides = [1, 1]} : vector<4x256xbf16> to vector<4x128xbf16>
    %10 = vector.extract_strided_slice %5 {offsets = [0, 0], sizes = [4, 128], strides = [1, 1]} : vector<4x256xbf16> to vector<4x128xbf16>
    %11 = vector.extract_strided_slice %7 {offsets = [0, 0], sizes = [4, 128], strides = [1, 1]} : vector<4x256xbf16> to vector<4x128xbf16>
    %12 = vector.extract_strided_slice %1 {offsets = [0, 1], sizes = [4, 128], strides = [1, 1]} : vector<4x256xbf16> to vector<4x128xbf16>
    %13 = vector.extract_strided_slice %3 {offsets = [0, 1], sizes = [4, 128], strides = [1, 1]} : vector<4x256xbf16> to vector<4x128xbf16>
    %14 = vector.extract_strided_slice %5 {offsets = [0, 1], sizes = [4, 128], strides = [1, 1]} : vector<4x256xbf16> to vector<4x128xbf16>
    %15 = vector.extract_strided_slice %7 {offsets = [0, 1], sizes = [4, 128], strides = [1, 1]} : vector<4x256xbf16> to vector<4x128xbf16>
    %16 = vector.extract_strided_slice %1 {offsets = [0, 2], sizes = [4, 128], strides = [1, 1]} : vector<4x256xbf16> to vector<4x128xbf16>
    %17 = vector.extract_strided_slice %3 {offsets = [0, 2], sizes = [4, 128], strides = [1, 1]} : vector<4x256xbf16> to vector<4x128xbf16>
    %18 = vector.extract_strided_slice %5 {offsets = [0, 2], sizes = [4, 128], strides = [1, 1]} : vector<4x256xbf16> to vector<4x128xbf16>
    %c0_12 = arith.constant 0 : index
    %c0_13 = arith.constant 0 : index
    %c0_14 = arith.constant 0 : index
    %19 = vector.load %arg1[%c0_12, %c0_13, %c0_14] : memref<8x8x4xbf16, #tpu.memory_space<vmem>>, vector<1x8x4xbf16>
    %20 = vector.shape_cast %19 : vector<1x8x4xbf16> to vector<8x4xbf16>
    %c1_15 = arith.constant 1 : index
    %c0_16 = arith.constant 0 : index
    %c0_17 = arith.constant 0 : index
    %21 = vector.load %arg1[%c1_15, %c0_16, %c0_17] : memref<8x8x4xbf16, #tpu.memory_space<vmem>>, vector<1x8x4xbf16>
    %22 = vector.shape_cast %21 : vector<1x8x4xbf16> to vector<8x4xbf16>
    %c2_18 = arith.constant 2 : index
    %c0_19 = arith.constant 0 : index
    %c0_20 = arith.constant 0 : index
    %23 = vector.load %arg1[%c2_18, %c0_19, %c0_20] : memref<8x8x4xbf16, #tpu.memory_space<vmem>>, vector<1x8x4xbf16>
    %24 = vector.shape_cast %23 : vector<1x8x4xbf16> to vector<8x4xbf16>
    %c3_21 = arith.constant 3 : index
    %c0_22 = arith.constant 0 : index
    %c0_23 = arith.constant 0 : index
    %25 = vector.load %arg1[%c3_21, %c0_22, %c0_23] : memref<8x8x4xbf16, #tpu.memory_space<vmem>>, vector<1x8x4xbf16>
    %26 = vector.shape_cast %25 : vector<1x8x4xbf16> to vector<8x4xbf16>
    %c4 = arith.constant 4 : index
    %c0_24 = arith.constant 0 : index
    %c0_25 = arith.constant 0 : index
    %27 = vector.load %arg1[%c4, %c0_24, %c0_25] : memref<8x8x4xbf16, #tpu.memory_space<vmem>>, vector<1x8x4xbf16>
    %28 = vector.shape_cast %27 : vector<1x8x4xbf16> to vector<8x4xbf16>
    %c5 = arith.constant 5 : index
    %c0_26 = arith.constant 0 : index
    %c0_27 = arith.constant 0 : index
    %29 = vector.load %arg1[%c5, %c0_26, %c0_27] : memref<8x8x4xbf16, #tpu.memory_space<vmem>>, vector<1x8x4xbf16>
    %30 = vector.shape_cast %29 : vector<1x8x4xbf16> to vector<8x4xbf16>
    %c6 = arith.constant 6 : index
    %c0_28 = arith.constant 0 : index
    %c0_29 = arith.constant 0 : index
    %31 = vector.load %arg1[%c6, %c0_28, %c0_29] : memref<8x8x4xbf16, #tpu.memory_space<vmem>>, vector<1x8x4xbf16>
    %32 = vector.shape_cast %31 : vector<1x8x4xbf16> to vector<8x4xbf16>
    %c7 = arith.constant 7 : index
    %c0_30 = arith.constant 0 : index
    %c0_31 = arith.constant 0 : index
    %33 = vector.load %arg1[%c7, %c0_30, %c0_31] : memref<8x8x4xbf16, #tpu.memory_space<vmem>>, vector<1x8x4xbf16>
    %34 = vector.shape_cast %33 : vector<1x8x4xbf16> to vector<8x4xbf16>
    %cst = arith.constant dense<0.000000e+00> : vector<8x128xf32>
    %35 = tpu.matmul %20, %8, %cst {dimension_numbers = #tpu.dot_dimension_numbers<[1], [0], [0], [1], [0, 0, 1, 1], [], []>} : vector<8x4xbf16>, vector<4x128xbf16>, vector<8x128xf32> -> vector<8x128xf32>
    %cst_32 = arith.constant dense<0.000000e+00> : vector<8x128xf32>
    %36 = tpu.matmul %22, %9, %cst_32 {dimension_numbers = #tpu.dot_dimension_numbers<[1], [0], [0], [1], [0, 0, 1, 1], [], []>} : vector<8x4xbf16>, vector<4x128xbf16>, vector<8x128xf32> -> vector<8x128xf32>
    %37 = arith.addf %35, %36 : vector<8x128xf32>
    %cst_33 = arith.constant dense<0.000000e+00> : vector<8x128xf32>
    %38 = tpu.matmul %24, %10, %cst_33 {dimension_numbers = #tpu.dot_dimension_numbers<[1], [0], [0], [1], [0, 0, 1, 1], [], []>} : vector<8x4xbf16>, vector<4x128xbf16>, vector<8x128xf32> -> vector<8x128xf32>
    %39 = arith.addf %37, %38 : vector<8x128xf32>
    %cst_34 = arith.constant dense<0.000000e+00> : vector<8x128xf32>
    %40 = tpu.matmul %26, %11, %cst_34 {dimension_numbers = #tpu.dot_dimension_numbers<[1], [0], [0], [1], [0, 0, 1, 1], [], []>} : vector<8x4xbf16>, vector<4x128xbf16>, vector<8x128xf32> -> vector<8x128xf32>
    %41 = arith.addf %39, %40 : vector<8x128xf32>
    %cst_35 = arith.constant dense<0.000000e+00> : vector<8x128xf32>
    %42 = tpu.matmul %28, %12, %cst_35 {dimension_numbers = #tpu.dot_dimension_numbers<[1], [0], [0], [1], [0, 0, 1, 1], [], []>} : vector<8x4xbf16>, vector<4x128xbf16>, vector<8x128xf32> -> vector<8x128xf32>
    %43 = arith.addf %41, %42 : vector<8x128xf32>
    %cst_36 = arith.constant dense<0.000000e+00> : vector<8x128xf32>
    %44 = tpu.matmul %30, %13, %cst_36 {dimension_numbers = #tpu.dot_dimension_numbers<[1], [0], [0], [1], [0, 0, 1, 1], [], []>} : vector<8x4xbf16>, vector<4x128xbf16>, vector<8x128xf32> -> vector<8x128xf32>
    %45 = arith.addf %43, %44 : vector<8x128xf32>
    %cst_37 = arith.constant dense<0.000000e+00> : vector<8x128xf32>
    %46 = tpu.matmul %32, %14, %cst_37 {dimension_numbers = #tpu.dot_dimension_numbers<[1], [0], [0], [1], [0, 0, 1, 1], [], []>} : vector<8x4xbf16>, vector<4x128xbf16>, vector<8x128xf32> -> vector<8x128xf32>
    %47 = arith.addf %45, %46 : vector<8x128xf32>
    %cst_38 = arith.constant dense<0.000000e+00> : vector<8x128xf32>
    %48 = tpu.matmul %34, %15, %cst_38 {dimension_numbers = #tpu.dot_dimension_numbers<[1], [0], [0], [1], [0, 0, 1, 1], [], []>} : vector<8x4xbf16>, vector<4x128xbf16>, vector<8x128xf32> -> vector<8x128xf32>
    %49 = arith.addf %47, %48 : vector<8x128xf32>
    %cst_39 = arith.constant dense<0.000000e+00> : vector<8x128xf32>
    %50 = tpu.matmul %20, %9, %cst_39 {dimension_numbers = #tpu.dot_dimension_numbers<[1], [0], [0], [1], [0, 0, 1, 1], [], []>} : vector<8x4xbf16>, vector<4x128xbf16>, vector<8x128xf32> -> vector<8x128xf32>
    %cst_40 = arith.constant dense<0.000000e+00> : vector<8x128xf32>
    %51 = tpu.matmul %22, %10, %cst_40 {dimension_numbers = #tpu.dot_dimension_numbers<[1], [0], [0], [1], [0, 0, 1, 1], [], []>} : vector<8x4xbf16>, vector<4x128xbf16>, vector<8x128xf32> -> vector<8x128xf32>
    %52 = arith.addf %50, %51 : vector<8x128xf32>
    %cst_41 = arith.constant dense<0.000000e+00> : vector<8x128xf32>
    %53 = tpu.matmul %24, %11, %cst_41 {dimension_numbers = #tpu.dot_dimension_numbers<[1], [0], [0], [1], [0, 0, 1, 1], [], []>} : vector<8x4xbf16>, vector<4x128xbf16>, vector<8x128xf32> -> vector<8x128xf32>
    %54 = arith.addf %52, %53 : vector<8x128xf32>
    %cst_42 = arith.constant dense<0.000000e+00> : vector<8x128xf32>
    %55 = tpu.matmul %26, %12, %cst_42 {dimension_numbers = #tpu.dot_dimension_numbers<[1], [0], [0], [1], [0, 0, 1, 1], [], []>} : vector<8x4xbf16>, vector<4x128xbf16>, vector<8x128xf32> -> vector<8x128xf32>
    %56 = arith.addf %54, %55 : vector<8x128xf32>
    %cst_43 = arith.constant dense<0.000000e+00> : vector<8x128xf32>
    %57 = tpu.matmul %28, %13, %cst_43 {dimension_numbers = #tpu.dot_dimension_numbers<[1], [0], [0], [1], [0, 0, 1, 1], [], []>} : vector<8x4xbf16>, vector<4x128xbf16>, vector<8x128xf32> -> vector<8x128xf32>
    %58 = arith.addf %56, %57 : vector<8x128xf32>
    %cst_44 = arith.constant dense<0.000000e+00> : vector<8x128xf32>
    %59 = tpu.matmul %30, %14, %cst_44 {dimension_numbers = #tpu.dot_dimension_numbers<[1], [0], [0], [1], [0, 0, 1, 1], [], []>} : vector<8x4xbf16>, vector<4x128xbf16>, vector<8x128xf32> -> vector<8x128xf32>
    %60 = arith.addf %58, %59 : vector<8x128xf32>
    %cst_45 = arith.constant dense<0.000000e+00> : vector<8x128xf32>
    %61 = tpu.matmul %32, %15, %cst_45 {dimension_numbers = #tpu.dot_dimension_numbers<[1], [0], [0], [1], [0, 0, 1, 1], [], []>} : vector<8x4xbf16>, vector<4x128xbf16>, vector<8x128xf32> -> vector<8x128xf32>
    %62 = arith.addf %60, %61 : vector<8x128xf32>
    %cst_46 = arith.constant dense<0.000000e+00> : vector<8x128xf32>
    %63 = tpu.matmul %34, %16, %cst_46 {dimension_numbers = #tpu.dot_dimension_numbers<[1], [0], [0], [1], [0, 0, 1, 1], [], []>} : vector<8x4xbf16>, vector<4x128xbf16>, vector<8x128xf32> -> vector<8x128xf32>
    %64 = arith.addf %62, %63 : vector<8x128xf32>
    %65 = arith.maximumf %49, %64 : vector<8x128xf32>
    %cst_47 = arith.constant dense<0.000000e+00> : vector<8x128xf32>
    %66 = tpu.matmul %20, %10, %cst_47 {dimension_numbers = #tpu.dot_dimension_numbers<[1], [0], [0], [1], [0, 0, 1, 1], [], []>} : vector<8x4xbf16>, vector<4x128xbf16>, vector<8x128xf32> -> vector<8x128xf32>
    %cst_48 = arith.constant dense<0.000000e+00> : vector<8x128xf32>
    %67 = tpu.matmul %22, %11, %cst_48 {dimension_numbers = #tpu.dot_dimension_numbers<[1], [0], [0], [1], [0, 0, 1, 1], [], []>} : vector<8x4xbf16>, vector<4x128xbf16>, vector<8x128xf32> -> vector<8x128xf32>
    %68 = arith.addf %66, %67 : vector<8x128xf32>
    %cst_49 = arith.constant dense<0.000000e+00> : vector<8x128xf32>
    %69 = tpu.matmul %24, %12, %cst_49 {dimension_numbers = #tpu.dot_dimension_numbers<[1], [0], [0], [1], [0, 0, 1, 1], [], []>} : vector<8x4xbf16>, vector<4x128xbf16>, vector<8x128xf32> -> vector<8x128xf32>
    %70 = arith.addf %68, %69 : vector<8x128xf32>
    %cst_50 = arith.constant dense<0.000000e+00> : vector<8x128xf32>
    %71 = tpu.matmul %26, %13, %cst_50 {dimension_numbers = #tpu.dot_dimension_numbers<[1], [0], [0], [1], [0, 0, 1, 1], [], []>} : vector<8x4xbf16>, vector<4x128xbf16>, vector<8x128xf32> -> vector<8x128xf32>
    %72 = arith.addf %70, %71 : vector<8x128xf32>
    %cst_51 = arith.constant dense<0.000000e+00> : vector<8x128xf32>
    %73 = tpu.matmul %28, %14, %cst_51 {dimension_numbers = #tpu.dot_dimension_numbers<[1], [0], [0], [1], [0, 0, 1, 1], [], []>} : vector<8x4xbf16>, vector<4x128xbf16>, vector<8x128xf32> -> vector<8x128xf32>
    %74 = arith.addf %72, %73 : vector<8x128xf32>
    %cst_52 = arith.constant dense<0.000000e+00> : vector<8x128xf32>
    %75 = tpu.matmul %30, %15, %cst_52 {dimension_numbers = #tpu.dot_dimension_numbers<[1], [0], [0], [1], [0, 0, 1, 1], [], []>} : vector<8x4xbf16>, vector<4x128xbf16>, vector<8x128xf32> -> vector<8x128xf32>
    %76 = arith.addf %74, %75 : vector<8x128xf32>
    %cst_53 = arith.constant dense<0.000000e+00> : vector<8x128xf32>
    %77 = tpu.matmul %32, %16, %cst_53 {dimension_numbers = #tpu.dot_dimension_numbers<[1], [0], [0], [1], [0, 0, 1, 1], [], []>} : vector<8x4xbf16>, vector<4x128xbf16>, vector<8x128xf32> -> vector<8x128xf32>
    %78 = arith.addf %76, %77 : vector<8x128xf32>
    %cst_54 = arith.constant dense<0.000000e+00> : vector<8x128xf32>
    %79 = tpu.matmul %34, %17, %cst_54 {dimension_numbers = #tpu.dot_dimension_numbers<[1], [0], [0], [1], [0, 0, 1, 1], [], []>} : vector<8x4xbf16>, vector<4x128xbf16>, vector<8x128xf32> -> vector<8x128xf32>
    %80 = arith.addf %78, %79 : vector<8x128xf32>
    %81 = arith.maximumf %65, %80 : vector<8x128xf32>
    %cst_55 = arith.constant dense<0.000000e+00> : vector<8x128xf32>
    %82 = tpu.matmul %20, %11, %cst_55 {dimension_numbers = #tpu.dot_dimension_numbers<[1], [0], [0], [1], [0, 0, 1, 1], [], []>} : vector<8x4xbf16>, vector<4x128xbf16>, vector<8x128xf32> -> vector<8x128xf32>
    %cst_56 = arith.constant dense<0.000000e+00> : vector<8x128xf32>
    %83 = tpu.matmul %22, %12, %cst_56 {dimension_numbers = #tpu.dot_dimension_numbers<[1], [0], [0], [1], [0, 0, 1, 1], [], []>} : vector<8x4xbf16>, vector<4x128xbf16>, vector<8x128xf32> -> vector<8x128xf32>
    %84 = arith.addf %82, %83 : vector<8x128xf32>
    %cst_57 = arith.constant dense<0.000000e+00> : vector<8x128xf32>
    %85 = tpu.matmul %24, %13, %cst_57 {dimension_numbers = #tpu.dot_dimension_numbers<[1], [0], [0], [1], [0, 0, 1, 1], [], []>} : vector<8x4xbf16>, vector<4x128xbf16>, vector<8x128xf32> -> vector<8x128xf32>
    %86 = arith.addf %84, %85 : vector<8x128xf32>
    %cst_58 = arith.constant dense<0.000000e+00> : vector<8x128xf32>
    %87 = tpu.matmul %26, %14, %cst_58 {dimension_numbers = #tpu.dot_dimension_numbers<[1], [0], [0], [1], [0, 0, 1, 1], [], []>} : vector<8x4xbf16>, vector<4x128xbf16>, vector<8x128xf32> -> vector<8x128xf32>
    %88 = arith.addf %86, %87 : vector<8x128xf32>
    %cst_59 = arith.constant dense<0.000000e+00> : vector<8x128xf32>
    %89 = tpu.matmul %28, %15, %cst_59 {dimension_numbers = #tpu.dot_dimension_numbers<[1], [0], [0], [1], [0, 0, 1, 1], [], []>} : vector<8x4xbf16>, vector<4x128xbf16>, vector<8x128xf32> -> vector<8x128xf32>
    %90 = arith.addf %88, %89 : vector<8x128xf32>
    %cst_60 = arith.constant dense<0.000000e+00> : vector<8x128xf32>
    %91 = tpu.matmul %30, %16, %cst_60 {dimension_numbers = #tpu.dot_dimension_numbers<[1], [0], [0], [1], [0, 0, 1, 1], [], []>} : vector<8x4xbf16>, vector<4x128xbf16>, vector<8x128xf32> -> vector<8x128xf32>
    %92 = arith.addf %90, %91 : vector<8x128xf32>
    %cst_61 = arith.constant dense<0.000000e+00> : vector<8x128xf32>
    %93 = tpu.matmul %32, %17, %cst_61 {dimension_numbers = #tpu.dot_dimension_numbers<[1], [0], [0], [1], [0, 0, 1, 1], [], []>} : vector<8x4xbf16>, vector<4x128xbf16>, vector<8x128xf32> -> vector<8x128xf32>
    %94 = arith.addf %92, %93 : vector<8x128xf32>
    %cst_62 = arith.constant dense<0.000000e+00> : vector<8x128xf32>
    %95 = tpu.matmul %34, %18, %cst_62 {dimension_numbers = #tpu.dot_dimension_numbers<[1], [0], [0], [1], [0, 0, 1, 1], [], []>} : vector<8x4xbf16>, vector<4x128xbf16>, vector<8x128xf32> -> vector<8x128xf32>
    %96 = arith.addf %94, %95 : vector<8x128xf32>
    %97 = arith.maximumf %81, %96 : vector<8x128xf32>
    %c0_63 = arith.constant 0 : index
    %c0_64 = arith.constant 0 : index
    %98 = vector.load %arg2[%c0_63, %c0_64] : memref<8x1xf32, #tpu.memory_space<vmem>>, vector<8x1xf32>
    %99 = vector.broadcast %98 : vector<8x1xf32> to vector<8x128xf32>
    %100 = arith.addf %97, %99 : vector<8x128xf32>
    %cst_65 = arith.constant 0.000000e+00 : f32
    %101 = vector.broadcast %cst_65 : f32 to vector<8x128xf32>
    %102 = arith.maximumf %100, %101 : vector<8x128xf32>
    %c0_66 = arith.constant 0 : index
    %c0_67 = arith.constant 0 : index
    %c0_68 = arith.constant 0 : index
    %103 = vector.load %arg4[%c0_66, %c0_67, %c0_68] : memref<1x8x128xf32, #tpu.memory_space<vmem>>, vector<1x8x128xf32>
    %104 = vector.shape_cast %103 : vector<1x8x128xf32> to vector<8x128xf32>
    %105 = vector.shape_cast %102 : vector<8x128xf32> to vector<1x8x128xf32>
    tpu.vector_store %arg4[%c0_66, %c0_67, %c0_68], %105 {strides = array<i32>} : memref<1x8x128xf32, #tpu.memory_space<vmem>>, vector<1x8x128xf32>,
    return
  }
  func.func @transform_0(%arg0: i32) -> (i32, i32, i32) {
    %c0_i32 = arith.constant 0 : i32
    %c0_i32_0 = arith.constant 0 : i32
    %c0_i32_1 = arith.constant 0 : i32
    %c0_i32_2 = arith.constant 0 : i32
    return %c0_i32, %c0_i32_0, %c0_i32_1 : i32, i32, i32
  }
  func.func @transform_1(%arg0: i32) -> (i32, i32) {
    %c0_i32 = arith.constant 0 : i32
    %c0_i32_0 = arith.constant 0 : i32
    %c0_i32_1 = arith.constant 0 : i32
    return %c0_i32, %c0_i32_0 : i32, i32
  }
  func.func @transform_2(%arg0: i32) -> (i32, i32, i32, i32) {
    %c0_i32 = arith.constant 0 : i32
    %c0_i32_0 = arith.constant 0 : i32
    %c0_i32_1 = arith.constant 0 : i32
    %c0_i32_2 = arith.constant 0 : i32
    return %arg0, %c0_i32, %c0_i32_0, %c0_i32_1 : i32, i32, i32, i32
  }
  func.func @transform_3(%arg0: i32) -> (i32, i32, i32) {
    %c0_i32 = arith.constant 0 : i32
    %c0_i32_0 = arith.constant 0 : i32
    %c0_i32_1 = arith.constant 0 : i32
    return %arg0, %c0_i32, %c0_i32_0 : i32, i32, i32
  }
}

</mosaic_0001>

<llo_original>
// kernel: tpu_custom_call.1
$region0: #{tpu_custom_call.1}
  #allocation0 [shape = 'u32[]', space=smem, size = 0x4, offset = 0x4, fixed_abs, tag = 'smem constant byte address 0x4 - core index']
  #allocation1 [shape = 'u32[144,128]{1,0:T(1,128)}', space=vmem, size = 0x12000, scoped, tag = 'internal scratch']
  %s0 = inlined_call_operand.vmem [shape: bf16[8,8,4], index: 0, kind: input, shape index: {}]
  %s1 = inlined_call_operand.vmem [shape: f32[8,1], index: 1, kind: input, shape index: {}]
  %s2 = inlined_call_operand.hbm [shape: bf16[8,4,4,256], index: 2, kind: input, shape index: {}]
  %s3 = inlined_call_operand.hbm [shape: f32[8,8,128], index: 3, kind: output, shape index: {}]
  %s4 = sld [smem:[#allocation0]]
  $region49: #{tpu_custom_call.1} parent=0
    _
  %s6 = ssub.s32 1, %s4
  %s7 = scalar_select 0, %s6, %s4
  $region1: #{tpu_custom_call.1} parent=0
    #allocation2 [shape = 'u8[16384]{0}', space=vmem, size = 0x4000, scoped, tag = 'input window, operand 2']
    #allocation3 [shape = 's32[2]{0}', space=sflag, size = 0x8, scoped, tag = 'scoped memory for tpu_custom_call.1']
    #allocation4 [shape = 's32[2]{0}', space=sflag, size = 0x8, scoped, tag = 'scoped memory for tpu_custom_call.1']
    #allocation5 [shape = 'u8[8192]{0}', space=vmem, size = 0x2000, scoped, tag = 'output window, operand 0']
    %8 = vsyncpa [#allocation3], 0
    %s9 = scalar_lea.sflag [#allocation3], 1
    %10 = vsyncpa %s9, 0
    %11 = vsyncpa [#allocation4], 0
    %s12 = scalar_lea.sflag [#allocation4], 1
    %13 = vsyncpa %s12, 0
    loop: start=0, step=1, limit=10
    $region2: #{tpu_custom_call.1} parent=1 // loop_pre_header
      _
    $region3: #{tpu_custom_call.1} parent=1 // loop_header
      %s15 = sphi 0, %s19
      %p16 = scmp.ge.s32.totalorder %s15, 10
      %s23 = sphi 0, %s23
      %s25 = sphi 0, %s23
      %s26 = sphi 0, %s25
      %s40 = sphi 0, %s26
      %s44 = sphi 0, %s44
      %s46 = sphi 0, %s44
      %s47 = sphi 0, %s46
      %s61 = sphi 0, %s47
      %s67 = sphi 0, %s69
      %s70 = sphi 0, %s67
      %s71 = sphi 0, %s70
      %s87 = sphi 0, %s71
      %s93 = sphi 0, %s95
      %s96 = sphi 0, %s93
      %s97 = sphi 0, %s96
      %s113 = sphi 0, %s97
    $region4: #{tpu_custom_call.1} parent=1 // loop_header_branch
      %18 = sbr.rel (%p16) target = $region8
    $region5: #{tpu_custom_call.1} parent=1 // loop_body
      %s20 = ssub.s32 %s15, 1
      %s21 = ssub.s32 %s15, 2
      %s22 = sadd.s32 %s15, 1
      %s24 = sadd.s32 %s23, 1
      %p27 = scmp.eq.s32.totalorder %s15, 7
      %p28 = scmp.ne.s32.totalorder %s23, %s25
      %p29 = scmp.eq.s32.totalorder %s15, 0
      %p30 = por %p28, %p29
      %p31 = scmp.ne.s32.totalorder %s23, %s25
      %p32 = scmp.eq.s32.totalorder %s20, 7
      %p33 = por %p31, %p32
      %p34 = scmp.ne.s32.totalorder %s25, %s26
      %p35 = scmp.eq.s32.totalorder %s20, 0
      %p36 = por %p34, %p35
      %p37 = scmp.ne.s32.totalorder %s25, %s26
      %p38 = scmp.eq.s32.totalorder %s21, 7
      %p39 = por %p37, %p38
      %p41 = scmp.ne.s32.totalorder %s26, %s40
      %p42 = scmp.eq.s32.totalorder %s21, 0
      %p43 = por %p41, %p42
      %s45 = sadd.s32 %s44, 1
      %p48 = scmp.eq.s32.totalorder %s15, 7
      %p49 = scmp.ne.s32.totalorder %s44, %s46
      %p50 = scmp.eq.s32.totalorder %s15, 0
      %p51 = por %p49, %p50
      %p52 = scmp.ne.s32.totalorder %s44, %s46
      %p53 = scmp.eq.s32.totalorder %s20, 7
      %p54 = por %p52, %p53
      %p55 = scmp.ne.s32.totalorder %s46, %s47
      %p56 = scmp.eq.s32.totalorder %s20, 0
      %p57 = por %p55, %p56
      %p58 = scmp.ne.s32.totalorder %s46, %s47
      %p59 = scmp.eq.s32.totalorder %s21, 7
      %p60 = por %p58, %p59
      %p62 = scmp.ne.s32.totalorder %s47, %s61
      %p63 = scmp.eq.s32.totalorder %s21, 0
      %p64 = por %p62, %p63
      %s65 = ssub.s32 %s15, %s22
      %p66 = scmp.eq.s32.totalorder %s65, 0
      %s68 = sadd.s32 %s67, 1
      %s69 = scalar_select %p66, %s67, %s68
      %p72 = pneg %p66
      %p73 = scmp.eq.s32.totalorder %s15, 7
      %p74 = por %p72, %p73
      %p75 = scmp.ne.s32.totalorder %s67, %s70
      %p76 = scmp.eq.s32.totalorder %s15, 0
      %p77 = por %p75, %p76
      %p78 = scmp.ne.s32.totalorder %s67, %s70
      %p79 = scmp.eq.s32.totalorder %s20, 7
      %p80 = por %p78, %p79
      %p81 = scmp.ne.s32.totalorder %s70, %s71
      %p82 = scmp.eq.s32.totalorder %s20, 0
      %p83 = por %p81, %p82
      %p84 = scmp.ne.s32.totalorder %s70, %s71
      %p85 = scmp.eq.s32.totalorder %s21, 7
      %p86 = por %p84, %p85
      %p88 = scmp.ne.s32.totalorder %s71, %s87
      %p89 = scmp.eq.s32.totalorder %s21, 0
      %p90 = por %p88, %p89
      %s91 = ssub.s32 %s15, %s22
      %p92 = scmp.eq.s32.totalorder %s91, 0
      %s94 = sadd.s32 %s93, 1
      %s95 = scalar_select %p92, %s93, %s94
      %p98 = pneg %p92
      %p99 = scmp.eq.s32.totalorder %s15, 7
      %p100 = por %p98, %p99
      %p101 = scmp.ne.s32.totalorder %s93, %s96
      %p102 = scmp.eq.s32.totalorder %s15, 0
      %p103 = por %p101, %p102
      %p104 = scmp.ne.s32.totalorder %s93, %s96
      %p105 = scmp.eq.s32.totalorder %s20, 7
      %p106 = por %p104, %p105
      %p107 = scmp.ne.s32.totalorder %s96, %s97
      %p108 = scmp.eq.s32.totalorder %s20, 0
      %p109 = por %p107, %p108
      %p110 = scmp.ne.s32.totalorder %s96, %s97
      %p111 = scmp.eq.s32.totalorder %s21, 7
      %p112 = por %p110, %p111
      %p114 = scmp.ne.s32.totalorder %s97, %s113
      %p115 = scmp.eq.s32.totalorder %s21, 0
      %p116 = por %p114, %p115
      %p117 = scmp.le.s32.totalorder 1, %s15
      %p118 = scmp.lt.s32.totalorder %s15, 9
      %p119 = pnand %p117, %p118
      %p120 = pneg %p119
      // Predicated region
      $region9: #{tpu_custom_call.1} parent=5 // pred_check
        _
      $region10: #{tpu_custom_call.1} parent=5 // pred_check_branch
        %122 = sbr.rel (%p119) target = $region12
      $region11: #{tpu_custom_call.1} parent=5 // pred_region
        %s123 = ssub.s32 %s15, 1
        // Predicated region
        $region13: #{tpu_custom_call.1} parent=11 // pred_check
          %p124 = pneg %p36
        $region14: #{tpu_custom_call.1} parent=11 // pred_check_branch
          %126 = sbr.rel (%p124) target = $region16
        $region15: #{tpu_custom_call.1} parent=11 // pred_region
          _
        $region16: #{tpu_custom_call.1} parent=11 // pred_fallthru
          _
        // Predicated region
        $region17: #{tpu_custom_call.1} parent=11 // pred_check
          %p127 = pneg %p57
        $region18: #{tpu_custom_call.1} parent=11 // pred_check_branch
          %129 = sbr.rel (%p127) target = $region20
        $region19: #{tpu_custom_call.1} parent=11 // pred_region
          _
        $region20: #{tpu_custom_call.1} parent=11 // pred_fallthru
          _
      $region12: #{tpu_custom_call.1} parent=5 // pred_fallthru
        _
      %p130 = scmp.lt.s32.totalorder %s15, 8
      // Predicated region
      $region21: #{tpu_custom_call.1} parent=5 // pred_check
        %p131 = pneg %p130
      $region22: #{tpu_custom_call.1} parent=5 // pred_check_branch
        %133 = sbr.rel (%p131) target = $region24
      $region23: #{tpu_custom_call.1} parent=5 // pred_region
        // Predicated region
        $region25: #{tpu_custom_call.1} parent=23 // pred_check
          %p134 = pneg %p77
        $region26: #{tpu_custom_call.1} parent=23 // pred_check_branch
          %136 = sbr.rel (%p134) target = $region28
        $region27: #{tpu_custom_call.1} parent=23 // pred_region
          %s137 = sand.u32 %s67, 1
          %s138 = scalar_lea.sflag [#allocation3], %s137
          %s139 = sand.u32 %s67, 1
          %s140 = smul.addr %s139, 16
          %s141 = scalar_lea.vmem [#allocation2], %s140
          %s143 = ssub.s32 256, 256
          %144 = vsyncadd %s138, %s143
          %s145 = smul.addr %s15, 8
          %s146 = smul.addr %s145, 32
          %s147 = scalar_lea.hbm %s2, %s146
          %s148 = sshll.u32 %s141, 4
          %s149 = int_to_ptr.vmem [resolvable:$true] %s148
          %154 = dma.hbm_to_vmem [thread:$0]  %s147, 256, %s149, %s138, 64, 64, 4
        $region28: #{tpu_custom_call.1} parent=23 // pred_fallthru
          _
      $region24: #{tpu_custom_call.1} parent=5 // pred_fallthru
        _
      %p155 = scmp.le.s32.totalorder 1, %s15
      %p156 = scmp.lt.s32.totalorder %s15, 9
      %p157 = pnand %p155, %p156
      %p158 = pneg %p157
      // Predicated region
      $region29: #{tpu_custom_call.1} parent=5 // pred_check
        _
      $region30: #{tpu_custom_call.1} parent=5 // pred_check_branch
        %160 = sbr.rel (%p157) target = $region32
      $region31: #{tpu_custom_call.1} parent=5 // pred_region
        %s161 = ssub.s32 %s15, 1
        %s162 = sand.u32 %s70, 1
        %s163 = scalar_lea.sflag [#allocation3], %s162
        %s164 = sand.u32 %s70, 1
        %s165 = smul.addr %s164, 16
        %s166 = scalar_lea.vmem [#allocation2], %s165
        // Predicated region
        $region33: #{tpu_custom_call.1} parent=31 // pred_check
          %p167 = pneg %p83
        $region34: #{tpu_custom_call.1} parent=31 // pred_check_branch
          %169 = sbr.rel (%p167) target = $region36
        $region35: #{tpu_custom_call.1} parent=31 // pred_region
          %170 = dma.done %s163, 256
        $region36: #{tpu_custom_call.1} parent=31 // pred_fallthru
          _
        %p171 = pneg %p36
        %p172 = pneg %p33
        %p173 = pneg %p57
        %p174 = pneg %p54
        %s175 = sand.u32 %s70, 1
        %s176 = scalar_lea.sflag [#allocation3], %s175
        %s177 = sand.u32 %s70, 1
        %s178 = smul.addr %s177, 16
        %s179 = scalar_lea.vmem [#allocation2], %s178
        %p180 = pneg %p83
        %p181 = pneg %p80
        %p182 = pneg %p109
        %p183 = pneg %p106
        %s184 = sand.u32 %s96, 1
        %s185 = scalar_lea.sflag [#allocation4], %s184
        %s186 = sand.u32 %s96, 1
        %s187 = smul.addr %s186, 8
        %s188 = scalar_lea.vmem [#allocation5], %s187
        %v190 = vld [vmem:[%s166] sm:$0xf]
        %s191 = scalar_lea.vmem %s166, 4 [#allocation2]
        %v192 = vld [vmem:[%s191] sm:$0xf]
        %s193 = scalar_lea.vmem %s166, 8 [#allocation2]
        %v194 = vld [vmem:[%s193] sm:$0xf]
        %s195 = scalar_lea.vmem %s166, 12 [#allocation2]
        %v196 = vld [vmem:[%s195] sm:$0xf]
        %v197 = vld [vmem:[%s0] sm:$0xf]
        %s198 = scalar_lea.vmem %s0, 4
        %v199 = vld [vmem:[%s198] sm:$0xf]
        %s200 = scalar_lea.vmem %s0, 8
        %v201 = vld [vmem:[%s200] sm:$0xf]
        %s202 = scalar_lea.vmem %s0, 12
        %v203 = vld [vmem:[%s202] sm:$0xf]
        %s204 = scalar_lea.vmem %s0, 16
        %v205 = vld [vmem:[%s204] sm:$0xf]
        %s206 = scalar_lea.vmem %s0, 20
        %v207 = vld [vmem:[%s206] sm:$0xf]
        %s208 = scalar_lea.vmem %s0, 24
        %v209 = vld [vmem:[%s208] sm:$0xf]
        %s210 = scalar_lea.vmem %s0, 28
        %v211 = vld [vmem:[%s210] sm:$0xf]
        %vm212 = vcmask 31744
        %v214 = vsel %vm212, %v199, 0
        %vm216 = vcmask 1041408
        %v218 = vsel %vm216, %v192, 0
        %220 = vmatprep.subr.bf16.mxu0 0
        %221 = vmatpush1.bf16.msra.mxu0 %v218
        %222 = vmatprep.subr.bf16.mxu0 0
        %223 = vmatpush1.bf16.msra.mxu0 0
        %224 = vmatprep.subr.bf16.mxu0 0
        %225 = vmatpush1.bf16.msra.mxu0 0
        %226 = vmatprep.subr.bf16.mxu0 0
        %227 = vmatpush1.bf16.msra.mxu0 0
        %228 = vmatprep.subr.bf16.mxu0 0
        %229 = vmatpush1.bf16.msra.mxu0 0
        %230 = vmatprep.subr.bf16.mxu0 0
        %231 = vmatpush1.bf16.msra.mxu0 0
        %232 = vmatprep.subr.bf16.mxu0 0
        %233 = vmatpush1.bf16.msra.mxu0 0
        %234 = vmatprep.subr.bf16.mxu0 0
        %235 = vmatpush1.bf16.msra.mxu0 0
        %236 = vmatprep.subr.bf16.mxu0 0
        %237 = vmatpush1.bf16.msra.mxu0 0
        %238 = vmatprep.subr.bf16.mxu0 0
        %239 = vmatpush1.bf16.msra.mxu0 0
        %240 = vmatprep.subr.bf16.mxu0 0
        %241 = vmatpush1.bf16.msra.mxu0 0
        %242 = vmatprep.subr.bf16.mxu0 0
        %243 = vmatpush1.bf16.msra.mxu0 0
        %244 = vmatprep.subr.bf16.mxu0 0
        %245 = vmatpush1.bf16.msra.mxu0 0
        %246 = vmatprep.subr.bf16.mxu0 0
        %247 = vmatpush1.bf16.msra.mxu0 0
        %248 = vmatprep.subr.bf16.mxu0 0
        %249 = vmatpush1.bf16.msra.mxu0 0
        %250 = vmatprep.subr.bf16.mxu0 0
        %251 = vmatpush1.bf16.msra.mxu0 0
        %252 = vmatprep.mubr.bf16.mxu0 0
        %253 = vmatmul.mubr.bf16.gmra.mrb[0].mxu0 %v214
        %v254 = vpop.f32.mrb[0].mxu0
        %v255 = vadd.f32 0.0, %v254
        %v256 = vpop.f32.mrb[0].mxu0
        %v257 = vpop.f32.mrb[0].mxu0
        %v258 = vpop.f32.mrb[0].mxu0
        %259 = vdwg.mxu0
        %v261 = vsel %vm212, %v197, 0
        %v264 = vsel %vm216, %v190, 0
        %266 = vmatprep.subr.bf16.mxu0 0
        %267 = vmatpush1.bf16.msra.mxu0 %v264
        %268 = vmatprep.subr.bf16.mxu0 0
        %269 = vmatpush1.bf16.msra.mxu0 0
        %270 = vmatprep.subr.bf16.mxu0 0
        %271 = vmatpush1.bf16.msra.mxu0 0
        %272 = vmatprep.subr.bf16.mxu0 0
        %273 = vmatpush1.bf16.msra.mxu0 0
        %274 = vmatprep.subr.bf16.mxu0 0
        %275 = vmatpush1.bf16.msra.mxu0 0
        %276 = vmatprep.subr.bf16.mxu0 0
        %277 = vmatpush1.bf16.msra.mxu0 0
        %278 = vmatprep.subr.bf16.mxu0 0
        %279 = vmatpush1.bf16.msra.mxu0 0
        %280 = vmatprep.subr.bf16.mxu0 0
        %281 = vmatpush1.bf16.msra.mxu0 0
        %282 = vmatprep.subr.bf16.mxu0 0
        %283 = vmatpush1.bf16.msra.mxu0 0
        %284 = vmatprep.subr.bf16.mxu0 0
        %285 = vmatpush1.bf16.msra.mxu0 0
        %286 = vmatprep.subr.bf16.mxu0 0
        %287 = vmatpush1.bf16.msra.mxu0 0
        %288 = vmatprep.subr.bf16.mxu0 0
        %289 = vmatpush1.bf16.msra.mxu0 0
        %290 = vmatprep.subr.bf16.mxu0 0
        %291 = vmatpush1.bf16.msra.mxu0 0
        %292 = vmatprep.subr.bf16.mxu0 0
        %293 = vmatpush1.bf16.msra.mxu0 0
        %294 = vmatprep.subr.bf16.mxu0 0
        %295 = vmatpush1.bf16.msra.mxu0 0
        %296 = vmatprep.subr.bf16.mxu0 0
        %297 = vmatpush1.bf16.msra.mxu0 0
        %298 = vmatprep.mubr.bf16.mxu0 0
        %299 = vmatmul.mubr.bf16.gmra.mrb[0].mxu0 %v261
        %v300 = vpop.f32.mrb[0].mxu0
        %v301 = vadd.f32 %v255, %v300
        %v302 = vpop.f32.mrb[0].mxu0
        %v303 = vpop.f32.mrb[0].mxu0
        %v304 = vpop.f32.mrb[0].mxu0
        %305 = vdwg.mxu0
        %v307 = vsel %vm212, %v201, 0
        %v310 = vsel %vm216, %v194, 0
        %312 = vmatprep.subr.bf16.mxu0 0
        %313 = vmatpush1.bf16.msra.mxu0 %v310
        %314 = vmatprep.subr.bf16.mxu0 0
        %315 = vmatpush1.bf16.msra.mxu0 0
        %316 = vmatprep.subr.bf16.mxu0 0
        %317 = vmatpush1.bf16.msra.mxu0 0
        %318 = vmatprep.subr.bf16.mxu0 0
        %319 = vmatpush1.bf16.msra.mxu0 0
        %320 = vmatprep.subr.bf16.mxu0 0
        %321 = vmatpush1.bf16.msra.mxu0 0
        %322 = vmatprep.subr.bf16.mxu0 0
        %323 = vmatpush1.bf16.msra.mxu0 0
        %324 = vmatprep.subr.bf16.mxu0 0
        %325 = vmatpush1.bf16.msra.mxu0 0
        %326 = vmatprep.subr.bf16.mxu0 0
        %327 = vmatpush1.bf16.msra.mxu0 0
        %328 = vmatprep.subr.bf16.mxu0 0
        %329 = vmatpush1.bf16.msra.mxu0 0
        %330 = vmatprep.subr.bf16.mxu0 0
        %331 = vmatpush1.bf16.msra.mxu0 0
        %332 = vmatprep.subr.bf16.mxu0 0
        %333 = vmatpush1.bf16.msra.mxu0 0
        %334 = vmatprep.subr.bf16.mxu0 0
        %335 = vmatpush1.bf16.msra.mxu0 0
        %336 = vmatprep.subr.bf16.mxu0 0
        %337 = vmatpush1.bf16.msra.mxu0 0
        %338 = vmatprep.subr.bf16.mxu0 0
        %339 = vmatpush1.bf16.msra.mxu0 0
        %340 = vmatprep.subr.bf16.mxu0 0
        %341 = vmatpush1.bf16.msra.mxu0 0
        %342 = vmatprep.subr.bf16.mxu0 0
        %343 = vmatpush1.bf16.msra.mxu0 0
        %344 = vmatprep.mubr.bf16.mxu0 0
        %345 = vmatmul.mubr.bf16.gmra.mrb[0].mxu0 %v307
        %v346 = vpop.f32.mrb[0].mxu0
        %v347 = vadd.f32 0.0, %v346
        %v348 = vpop.f32.mrb[0].mxu0
        %v349 = vpop.f32.mrb[0].mxu0
        %v350 = vpop.f32.mrb[0].mxu0
        %351 = vdwg.mxu0
        %v352 = vadd.f32 %v301, %v347
        %v354 = vsel %vm212, %v203, 0
        %v357 = vsel %vm216, %v196, 0
        %359 = vmatprep.subr.bf16.mxu0 0
        %360 = vmatpush1.bf16.msra.mxu0 %v357
        %361 = vmatprep.subr.bf16.mxu0 0
        %362 = vmatpush1.bf16.msra.mxu0 0
        %363 = vmatprep.subr.bf16.mxu0 0
        %364 = vmatpush1.bf16.msra.mxu0 0
        %365 = vmatprep.subr.bf16.mxu0 0
        %366 = vmatpush1.bf16.msra.mxu0 0
        %367 = vmatprep.subr.bf16.mxu0 0
        %368 = vmatpush1.bf16.msra.mxu0 0
        %369 = vmatprep.subr.bf16.mxu0 0
        %370 = vmatpush1.bf16.msra.mxu0 0
        %371 = vmatprep.subr.bf16.mxu0 0
        %372 = vmatpush1.bf16.msra.mxu0 0
        %373 = vmatprep.subr.bf16.mxu0 0
        %374 = vmatpush1.bf16.msra.mxu0 0
        %375 = vmatprep.subr.bf16.mxu0 0
        %376 = vmatpush1.bf16.msra.mxu0 0
        %377 = vmatprep.subr.bf16.mxu0 0
        %378 = vmatpush1.bf16.msra.mxu0 0
        %379 = vmatprep.subr.bf16.mxu0 0
        %380 = vmatpush1.bf16.msra.mxu0 0
        %381 = vmatprep.subr.bf16.mxu0 0
        %382 = vmatpush1.bf16.msra.mxu0 0
        %383 = vmatprep.subr.bf16.mxu0 0
        %384 = vmatpush1.bf16.msra.mxu0 0
        %385 = vmatprep.subr.bf16.mxu0 0
        %386 = vmatpush1.bf16.msra.mxu0 0
        %387 = vmatprep.subr.bf16.mxu0 0
        %388 = vmatpush1.bf16.msra.mxu0 0
        %389 = vmatprep.subr.bf16.mxu0 0
        %390 = vmatpush1.bf16.msra.mxu0 0
        %391 = vmatprep.mubr.bf16.mxu0 0
        %392 = vmatmul.mubr.bf16.gmra.mrb[0].mxu0 %v354
        %v393 = vpop.f32.mrb[0].mxu0
        %v394 = vadd.f32 0.0, %v393
        %v395 = vpop.f32.mrb[0].mxu0
        %v396 = vpop.f32.mrb[0].mxu0
        %v397 = vpop.f32.mrb[0].mxu0
        %398 = vdwg.mxu0
        %v399 = vadd.f32 %v352, %v394
        %v402 = vunpack.c.l.s4 1983009808
        %v403 = vunpack.c.0.s8 %v402
        %v404 = vlaneseq
        %v405 = vshrl.u32 %v404, 7
        %v406 = vsub.s32 %v403, %v405
        %v407 = vrot.slane %v190, %v406
        %v408 = vcombine.high %v407, %v407
        %409 = vrot.lane.b32.xlu0 %v407, 127
        %v410 = vpop.permute.xlu0 %409
        %411 = vrot.lane.b32.xlu0 %v408, 127
        %v412 = vpop.permute.xlu0 %411
        %vm413 = vcmask 1039360
        %v414 = vsel %vm413, %v410, %v412
        %v416 = vsel %vm212, %v205, 0
        %v419 = vsel %vm216, %v414, 0
        %421 = vmatprep.subr.bf16.mxu0 0
        %422 = vmatpush1.bf16.msra.mxu0 %v419
        %423 = vmatprep.subr.bf16.mxu0 0
        %424 = vmatpush1.bf16.msra.mxu0 0
        %425 = vmatprep.subr.bf16.mxu0 0
        %426 = vmatpush1.bf16.msra.mxu0 0
        %427 = vmatprep.subr.bf16.mxu0 0
        %428 = vmatpush1.bf16.msra.mxu0 0
        %429 = vmatprep.subr.bf16.mxu0 0
        %430 = vmatpush1.bf16.msra.mxu0 0
        %431 = vmatprep.subr.bf16.mxu0 0
        %432 = vmatpush1.bf16.msra.mxu0 0
        %433 = vmatprep.subr.bf16.mxu0 0
        %434 = vmatpush1.bf16.msra.mxu0 0
        %435 = vmatprep.subr.bf16.mxu0 0
        %436 = vmatpush1.bf16.msra.mxu0 0
        %437 = vmatprep.subr.bf16.mxu0 0
        %438 = vmatpush1.bf16.msra.mxu0 0
        %439 = vmatprep.subr.bf16.mxu0 0
        %440 = vmatpush1.bf16.msra.mxu0 0
        %441 = vmatprep.subr.bf16.mxu0 0
        %442 = vmatpush1.bf16.msra.mxu0 0
        %443 = vmatprep.subr.bf16.mxu0 0
        %444 = vmatpush1.bf16.msra.mxu0 0
        %445 = vmatprep.subr.bf16.mxu0 0
        %446 = vmatpush1.bf16.msra.mxu0 0
        %447 = vmatprep.subr.bf16.mxu0 0
        %448 = vmatpush1.bf16.msra.mxu0 0
        %449 = vmatprep.subr.bf16.mxu0 0
        %450 = vmatpush1.bf16.msra.mxu0 0
        %451 = vmatprep.subr.bf16.mxu0 0
        %452 = vmatpush1.bf16.msra.mxu0 0
        %453 = vmatprep.mubr.bf16.mxu0 0
        %454 = vmatmul.mubr.bf16.gmra.mrb[0].mxu0 %v416
        %v455 = vpop.f32.mrb[0].mxu0
        %v456 = vadd.f32 0.0, %v455
        %v457 = vpop.f32.mrb[0].mxu0
        %v458 = vpop.f32.mrb[0].mxu0
        %v459 = vpop.f32.mrb[0].mxu0
        %460 = vdwg.mxu0
        %v461 = vadd.f32 %v399, %v456
        %v464 = vunpack.c.l.s4 1983009808
        %v465 = vunpack.c.0.s8 %v464
        %v466 = vlaneseq
        %v467 = vshrl.u32 %v466, 7
        %v468 = vsub.s32 %v465, %v467
        %v469 = vrot.slane %v192, %v468
        %v470 = vcombine.high %v469, %v469
        %471 = vrot.lane.b32.xlu0 %v469, 127
        %v472 = vpop.permute.xlu0 %471
        %473 = vrot.lane.b32.xlu0 %v470, 127
        %v474 = vpop.permute.xlu0 %473
        %v475 = vsel %vm413, %v472, %v474
        %v477 = vsel %vm212, %v207, 0
        %v480 = vsel %vm216, %v475, 0
        %482 = vmatprep.subr.bf16.mxu0 0
        %483 = vmatpush1.bf16.msra.mxu0 %v480
        %484 = vmatprep.subr.bf16.mxu0 0
        %485 = vmatpush1.bf16.msra.mxu0 0
        %486 = vmatprep.subr.bf16.mxu0 0
        %487 = vmatpush1.bf16.msra.mxu0 0
        %488 = vmatprep.subr.bf16.mxu0 0
        %489 = vmatpush1.bf16.msra.mxu0 0
        %490 = vmatprep.subr.bf16.mxu0 0
        %491 = vmatpush1.bf16.msra.mxu0 0
        %492 = vmatprep.subr.bf16.mxu0 0
        %493 = vmatpush1.bf16.msra.mxu0 0
        %494 = vmatprep.subr.bf16.mxu0 0
        %495 = vmatpush1.bf16.msra.mxu0 0
        %496 = vmatprep.subr.bf16.mxu0 0
        %497 = vmatpush1.bf16.msra.mxu0 0
        %498 = vmatprep.subr.bf16.mxu0 0
        %499 = vmatpush1.bf16.msra.mxu0 0
        %500 = vmatprep.subr.bf16.mxu0 0
        %501 = vmatpush1.bf16.msra.mxu0 0
        %502 = vmatprep.subr.bf16.mxu0 0
        %503 = vmatpush1.bf16.msra.mxu0 0
        %504 = vmatprep.subr.bf16.mxu0 0
        %505 = vmatpush1.bf16.msra.mxu0 0
        %506 = vmatprep.subr.bf16.mxu0 0
        %507 = vmatpush1.bf16.msra.mxu0 0
        %508 = vmatprep.subr.bf16.mxu0 0
        %509 = vmatpush1.bf16.msra.mxu0 0
        %510 = vmatprep.subr.bf16.mxu0 0
        %511 = vmatpush1.bf16.msra.mxu0 0
        %512 = vmatprep.subr.bf16.mxu0 0
        %513 = vmatpush1.bf16.msra.mxu0 0
        %514 = vmatprep.mubr.bf16.mxu0 0
        %515 = vmatmul.mubr.bf16.gmra.mrb[0].mxu0 %v477
        %v516 = vpop.f32.mrb[0].mxu0
        %v517 = vadd.f32 0.0, %v516
        %v518 = vpop.f32.mrb[0].mxu0
        %v519 = vpop.f32.mrb[0].mxu0
        %v520 = vpop.f32.mrb[0].mxu0
        %521 = vdwg.mxu0
        %v522 = vadd.f32 %v461, %v517
        %v525 = vunpack.c.l.s4 1983009808
        %v526 = vunpack.c.0.s8 %v525
        %v527 = vlaneseq
        %v528 = vshrl.u32 %v527, 7
        %v529 = vsub.s32 %v526, %v528
        %v530 = vrot.slane %v194, %v529
        %v531 = vcombine.high %v530, %v530
        %532 = vrot.lane.b32.xlu0 %v530, 127
        %v533 = vpop.permute.xlu0 %532
        %534 = vrot.lane.b32.xlu0 %v531, 127
        %v535 = vpop.permute.xlu0 %534
        %v536 = vsel %vm413, %v533, %v535
        %v538 = vsel %vm212, %v209, 0
        %v541 = vsel %vm216, %v536, 0
        %543 = vmatprep.subr.bf16.mxu0 0
        %544 = vmatpush1.bf16.msra.mxu0 %v541
        %545 = vmatprep.subr.bf16.mxu0 0
        %546 = vmatpush1.bf16.msra.mxu0 0
        %547 = vmatprep.subr.bf16.mxu0 0
        %548 = vmatpush1.bf16.msra.mxu0 0
        %549 = vmatprep.subr.bf16.mxu0 0
        %550 = vmatpush1.bf16.msra.mxu0 0
        %551 = vmatprep.subr.bf16.mxu0 0
        %552 = vmatpush1.bf16.msra.mxu0 0
        %553 = vmatprep.subr.bf16.mxu0 0
        %554 = vmatpush1.bf16.msra.mxu0 0
        %555 = vmatprep.subr.bf16.mxu0 0
        %556 = vmatpush1.bf16.msra.mxu0 0
        %557 = vmatprep.subr.bf16.mxu0 0
        %558 = vmatpush1.bf16.msra.mxu0 0
        %559 = vmatprep.subr.bf16.mxu0 0
        %560 = vmatpush1.bf16.msra.mxu0 0
        %561 = vmatprep.subr.bf16.mxu0 0
        %562 = vmatpush1.bf16.msra.mxu0 0
        %563 = vmatprep.subr.bf16.mxu0 0
        %564 = vmatpush1.bf16.msra.mxu0 0
        %565 = vmatprep.subr.bf16.mxu0 0
        %566 = vmatpush1.bf16.msra.mxu0 0
        %567 = vmatprep.subr.bf16.mxu0 0
        %568 = vmatpush1.bf16.msra.mxu0 0
        %569 = vmatprep.subr.bf16.mxu0 0
        %570 = vmatpush1.bf16.msra.mxu0 0
        %571 = vmatprep.subr.bf16.mxu0 0
        %572 = vmatpush1.bf16.msra.mxu0 0
        %573 = vmatprep.subr.bf16.mxu0 0
        %574 = vmatpush1.bf16.msra.mxu0 0
        %575 = vmatprep.mubr.bf16.mxu0 0
        %576 = vmatmul.mubr.bf16.gmra.mrb[0].mxu0 %v538
        %v577 = vpop.f32.mrb[0].mxu0
        %v578 = vadd.f32 0.0, %v577
        %v579 = vpop.f32.mrb[0].mxu0
        %v580 = vpop.f32.mrb[0].mxu0
        %v581 = vpop.f32.mrb[0].mxu0
        %582 = vdwg.mxu0
        %v583 = vadd.f32 %v522, %v578
        %v586 = vunpack.c.l.s4 1983009808
        %v587 = vunpack.c.0.s8 %v586
        %v588 = vlaneseq
        %v589 = vshrl.u32 %v588, 7
        %v590 = vsub.s32 %v587, %v589
        %v591 = vrot.slane %v196, %v590
        %v592 = vcombine.high %v591, %v591
        %593 = vrot.lane.b32.xlu0 %v591, 127
        %v594 = vpop.permute.xlu0 %593
        %595 = vrot.lane.b32.xlu0 %v592, 127
        %v596 = vpop.permute.xlu0 %595
        %v597 = vsel %vm413, %v594, %v596
        %v599 = vsel %vm212, %v211, 0
        %v602 = vsel %vm216, %v597, 0
        %604 = vmatprep.subr.bf16.mxu0 0
        %605 = vmatpush1.bf16.msra.mxu0 %v602
        %606 = vmatprep.subr.bf16.mxu0 0
        %607 = vmatpush1.bf16.msra.mxu0 0
        %608 = vmatprep.subr.bf16.mxu0 0
        %609 = vmatpush1.bf16.msra.mxu0 0
        %610 = vmatprep.subr.bf16.mxu0 0
        %611 = vmatpush1.bf16.msra.mxu0 0
        %612 = vmatprep.subr.bf16.mxu0 0
        %613 = vmatpush1.bf16.msra.mxu0 0
        %614 = vmatprep.subr.bf16.mxu0 0
        %615 = vmatpush1.bf16.msra.mxu0 0
        %616 = vmatprep.subr.bf16.mxu0 0
        %617 = vmatpush1.bf16.msra.mxu0 0
        %618 = vmatprep.subr.bf16.mxu0 0
        %619 = vmatpush1.bf16.msra.mxu0 0
        %620 = vmatprep.subr.bf16.mxu0 0
        %621 = vmatpush1.bf16.msra.mxu0 0
        %622 = vmatprep.subr.bf16.mxu0 0
        %623 = vmatpush1.bf16.msra.mxu0 0
        %624 = vmatprep.subr.bf16.mxu0 0
        %625 = vmatpush1.bf16.msra.mxu0 0
        %626 = vmatprep.subr.bf16.mxu0 0
        %627 = vmatpush1.bf16.msra.mxu0 0
        %628 = vmatprep.subr.bf16.mxu0 0
        %629 = vmatpush1.bf16.msra.mxu0 0
        %630 = vmatprep.subr.bf16.mxu0 0
        %631 = vmatpush1.bf16.msra.mxu0 0
        %632 = vmatprep.subr.bf16.mxu0 0
        %633 = vmatpush1.bf16.msra.mxu0 0
        %634 = vmatprep.subr.bf16.mxu0 0
        %635 = vmatpush1.bf16.msra.mxu0 0
        %636 = vmatprep.mubr.bf16.mxu0 0
        %637 = vmatmul.mubr.bf16.gmra.mrb[0].mxu0 %v599
        %v638 = vpop.f32.mrb[0].mxu0
        %v639 = vadd.f32 0.0, %v638
        %v640 = vpop.f32.mrb[0].mxu0
        %v641 = vpop.f32.mrb[0].mxu0
        %v642 = vpop.f32.mrb[0].mxu0
        %643 = vdwg.mxu0
        %v644 = vadd.f32 %v583, %v639
        %645 = vmatprep.subr.bf16.mxu0 0
        %646 = vmatpush1.bf16.msra.mxu0 %v310
        %647 = vmatprep.subr.bf16.mxu0 0
        %648 = vmatpush1.bf16.msra.mxu0 0
        %649 = vmatprep.subr.bf16.mxu0 0
        %650 = vmatpush1.bf16.msra.mxu0 0
        %651 = vmatprep.subr.bf16.mxu0 0
        %652 = vmatpush1.bf16.msra.mxu0 0
        %653 = vmatprep.subr.bf16.mxu0 0
        %654 = vmatpush1.bf16.msra.mxu0 0
        %655 = vmatprep.subr.bf16.mxu0 0
        %656 = vmatpush1.bf16.msra.mxu0 0
        %657 = vmatprep.subr.bf16.mxu0 0
        %658 = vmatpush1.bf16.msra.mxu0 0
        %659 = vmatprep.subr.bf16.mxu0 0
        %660 = vmatpush1.bf16.msra.mxu0 0
        %661 = vmatprep.subr.bf16.mxu0 0
        %662 = vmatpush1.bf16.msra.mxu0 0
        %663 = vmatprep.subr.bf16.mxu0 0
        %664 = vmatpush1.bf16.msra.mxu0 0
        %665 = vmatprep.subr.bf16.mxu0 0
        %666 = vmatpush1.bf16.msra.mxu0 0
        %667 = vmatprep.subr.bf16.mxu0 0
        %668 = vmatpush1.bf16.msra.mxu0 0
        %669 = vmatprep.subr.bf16.mxu0 0
        %670 = vmatpush1.bf16.msra.mxu0 0
        %671 = vmatprep.subr.bf16.mxu0 0
        %672 = vmatpush1.bf16.msra.mxu0 0
        %673 = vmatprep.subr.bf16.mxu0 0
        %674 = vmatpush1.bf16.msra.mxu0 0
        %675 = vmatprep.subr.bf16.mxu0 0
        %676 = vmatpush1.bf16.msra.mxu0 0
        %677 = vmatprep.mubr.bf16.mxu0 0
        %678 = vmatmul.mubr.bf16.gmra.mrb[0].mxu0 %v214
        %v679 = vpop.f32.mrb[0].mxu0
        %v680 = vadd.f32 0.0, %v679
        %v681 = vpop.f32.mrb[0].mxu0
        %v682 = vpop.f32.mrb[0].mxu0
        %v683 = vpop.f32.mrb[0].mxu0
        %684 = vdwg.mxu0
        %685 = vmatprep.subr.bf16.mxu0 0
        %686 = vmatpush1.bf16.msra.mxu0 %v218
        %687 = vmatprep.subr.bf16.mxu0 0
        %688 = vmatpush1.bf16.msra.mxu0 0
        %689 = vmatprep.subr.bf16.mxu0 0
        %690 = vmatpush1.bf16.msra.mxu0 0
        %691 = vmatprep.subr.bf16.mxu0 0
        %692 = vmatpush1.bf16.msra.mxu0 0
        %693 = vmatprep.subr.bf16.mxu0 0
        %694 = vmatpush1.bf16.msra.mxu0 0
        %695 = vmatprep.subr.bf16.mxu0 0
        %696 = vmatpush1.bf16.msra.mxu0 0
        %697 = vmatprep.subr.bf16.mxu0 0
        %698 = vmatpush1.bf16.msra.mxu0 0
        %699 = vmatprep.subr.bf16.mxu0 0
        %700 = vmatpush1.bf16.msra.mxu0 0
        %701 = vmatprep.subr.bf16.mxu0 0
        %702 = vmatpush1.bf16.msra.mxu0 0
        %703 = vmatprep.subr.bf16.mxu0 0
        %704 = vmatpush1.bf16.msra.mxu0 0
        %705 = vmatprep.subr.bf16.mxu0 0
        %706 = vmatpush1.bf16.msra.mxu0 0
        %707 = vmatprep.subr.bf16.mxu0 0
        %708 = vmatpush1.bf16.msra.mxu0 0
        %709 = vmatprep.subr.bf16.mxu0 0
        %710 = vmatpush1.bf16.msra.mxu0 0
        %711 = vmatprep.subr.bf16.mxu0 0
        %712 = vmatpush1.bf16.msra.mxu0 0
        %713 = vmatprep.subr.bf16.mxu0 0
        %714 = vmatpush1.bf16.msra.mxu0 0
        %715 = vmatprep.subr.bf16.mxu0 0
        %716 = vmatpush1.bf16.msra.mxu0 0
        %717 = vmatprep.mubr.bf16.mxu0 0
        %718 = vmatmul.mubr.bf16.gmra.mrb[0].mxu0 %v261
        %v719 = vpop.f32.mrb[0].mxu0
        %v720 = vadd.f32 %v680, %v719
        %v721 = vpop.f32.mrb[0].mxu0
        %v722 = vpop.f32.mrb[0].mxu0
        %v723 = vpop.f32.mrb[0].mxu0
        %724 = vdwg.mxu0
        %725 = vmatprep.subr.bf16.mxu0 0
        %726 = vmatpush1.bf16.msra.mxu0 %v357
        %727 = vmatprep.subr.bf16.mxu0 0
        %728 = vmatpush1.bf16.msra.mxu0 0
        %729 = vmatprep.subr.bf16.mxu0 0
        %730 = vmatpush1.bf16.msra.mxu0 0
        %731 = vmatprep.subr.bf16.mxu0 0
        %732 = vmatpush1.bf16.msra.mxu0 0
        %733 = vmatprep.subr.bf16.mxu0 0
        %734 = vmatpush1.bf16.msra.mxu0 0
        %735 = vmatprep.subr.bf16.mxu0 0
        %736 = vmatpush1.bf16.msra.mxu0 0
        %737 = vmatprep.subr.bf16.mxu0 0
        %738 = vmatpush1.bf16.msra.mxu0 0
        %739 = vmatprep.subr.bf16.mxu0 0
        %740 = vmatpush1.bf16.msra.mxu0 0
        %741 = vmatprep.subr.bf16.mxu0 0
        %742 = vmatpush1.bf16.msra.mxu0 0
        %743 = vmatprep.subr.bf16.mxu0 0
        %744 = vmatpush1.bf16.msra.mxu0 0
        %745 = vmatprep.subr.bf16.mxu0 0
        %746 = vmatpush1.bf16.msra.mxu0 0
        %747 = vmatprep.subr.bf16.mxu0 0
        %748 = vmatpush1.bf16.msra.mxu0 0
        %749 = vmatprep.subr.bf16.mxu0 0
        %750 = vmatpush1.bf16.msra.mxu0 0
        %751 = vmatprep.subr.bf16.mxu0 0
        %752 = vmatpush1.bf16.msra.mxu0 0
        %753 = vmatprep.subr.bf16.mxu0 0
        %754 = vmatpush1.bf16.msra.mxu0 0
        %755 = vmatprep.subr.bf16.mxu0 0
        %756 = vmatpush1.bf16.msra.mxu0 0
        %757 = vmatprep.mubr.bf16.mxu0 0
        %758 = vmatmul.mubr.bf16.gmra.mrb[0].mxu0 %v307
        %v759 = vpop.f32.mrb[0].mxu0
        %v760 = vadd.f32 0.0, %v759
        %v761 = vpop.f32.mrb[0].mxu0
        %v762 = vpop.f32.mrb[0].mxu0
        %v763 = vpop.f32.mrb[0].mxu0
        %764 = vdwg.mxu0
        %v765 = vadd.f32 %v720, %v760
        %766 = vmatprep.subr.bf16.mxu0 0
        %767 = vmatpush1.bf16.msra.mxu0 %v419
        %768 = vmatprep.subr.bf16.mxu0 0
        %769 = vmatpush1.bf16.msra.mxu0 0
        %770 = vmatprep.subr.bf16.mxu0 0
        %771 = vmatpush1.bf16.msra.mxu0 0
        %772 = vmatprep.subr.bf16.mxu0 0
        %773 = vmatpush1.bf16.msra.mxu0 0
        %774 = vmatprep.subr.bf16.mxu0 0
        %775 = vmatpush1.bf16.msra.mxu0 0
        %776 = vmatprep.subr.bf16.mxu0 0
        %777 = vmatpush1.bf16.msra.mxu0 0
        %778 = vmatprep.subr.bf16.mxu0 0
        %779 = vmatpush1.bf16.msra.mxu0 0
        %780 = vmatprep.subr.bf16.mxu0 0
        %781 = vmatpush1.bf16.msra.mxu0 0
        %782 = vmatprep.subr.bf16.mxu0 0
        %783 = vmatpush1.bf16.msra.mxu0 0
        %784 = vmatprep.subr.bf16.mxu0 0
        %785 = vmatpush1.bf16.msra.mxu0 0
        %786 = vmatprep.subr.bf16.mxu0 0
        %787 = vmatpush1.bf16.msra.mxu0 0
        %788 = vmatprep.subr.bf16.mxu0 0
        %789 = vmatpush1.bf16.msra.mxu0 0
        %790 = vmatprep.subr.bf16.mxu0 0
        %791 = vmatpush1.bf16.msra.mxu0 0
        %792 = vmatprep.subr.bf16.mxu0 0
        %793 = vmatpush1.bf16.msra.mxu0 0
        %794 = vmatprep.subr.bf16.mxu0 0
        %795 = vmatpush1.bf16.msra.mxu0 0
        %796 = vmatprep.subr.bf16.mxu0 0
        %797 = vmatpush1.bf16.msra.mxu0 0
        %798 = vmatprep.mubr.bf16.mxu0 0
        %799 = vmatmul.mubr.bf16.gmra.mrb[0].mxu0 %v354
        %v800 = vpop.f32.mrb[0].mxu0
        %v801 = vadd.f32 0.0, %v800
        %v802 = vpop.f32.mrb[0].mxu0
        %v803 = vpop.f32.mrb[0].mxu0
        %v804 = vpop.f32.mrb[0].mxu0
        %805 = vdwg.mxu0
        %v806 = vadd.f32 %v765, %v801
        %807 = vmatprep.subr.bf16.mxu0 0
        %808 = vmatpush1.bf16.msra.mxu0 %v480
        %809 = vmatprep.subr.bf16.mxu0 0
        %810 = vmatpush1.bf16.msra.mxu0 0
        %811 = vmatprep.subr.bf16.mxu0 0
        %812 = vmatpush1.bf16.msra.mxu0 0
        %813 = vmatprep.subr.bf16.mxu0 0
        %814 = vmatpush1.bf16.msra.mxu0 0
        %815 = vmatprep.subr.bf16.mxu0 0
        %816 = vmatpush1.bf16.msra.mxu0 0
        %817 = vmatprep.subr.bf16.mxu0 0
        %818 = vmatpush1.bf16.msra.mxu0 0
        %819 = vmatprep.subr.bf16.mxu0 0
        %820 = vmatpush1.bf16.msra.mxu0 0
        %821 = vmatprep.subr.bf16.mxu0 0
        %822 = vmatpush1.bf16.msra.mxu0 0
        %823 = vmatprep.subr.bf16.mxu0 0
        %824 = vmatpush1.bf16.msra.mxu0 0
        %825 = vmatprep.subr.bf16.mxu0 0
        %826 = vmatpush1.bf16.msra.mxu0 0
        %827 = vmatprep.subr.bf16.mxu0 0
        %828 = vmatpush1.bf16.msra.mxu0 0
        %829 = vmatprep.subr.bf16.mxu0 0
        %830 = vmatpush1.bf16.msra.mxu0 0
        %831 = vmatprep.subr.bf16.mxu0 0
        %832 = vmatpush1.bf16.msra.mxu0 0
        %833 = vmatprep.subr.bf16.mxu0 0
        %834 = vmatpush1.bf16.msra.mxu0 0
        %835 = vmatprep.subr.bf16.mxu0 0
        %836 = vmatpush1.bf16.msra.mxu0 0
        %837 = vmatprep.subr.bf16.mxu0 0
        %838 = vmatpush1.bf16.msra.mxu0 0
        %839 = vmatprep.mubr.bf16.mxu0 0
        %840 = vmatmul.mubr.bf16.gmra.mrb[0].mxu0 %v416
        %v841 = vpop.f32.mrb[0].mxu0
        %v842 = vadd.f32 0.0, %v841
        %v843 = vpop.f32.mrb[0].mxu0
        %v844 = vpop.f32.mrb[0].mxu0
        %v845 = vpop.f32.mrb[0].mxu0
        %846 = vdwg.mxu0
        %v847 = vadd.f32 %v806, %v842
        %848 = vmatprep.subr.bf16.mxu0 0
        %849 = vmatpush1.bf16.msra.mxu0 %v541
        %850 = vmatprep.subr.bf16.mxu0 0
        %851 = vmatpush1.bf16.msra.mxu0 0
        %852 = vmatprep.subr.bf16.mxu0 0
        %853 = vmatpush1.bf16.msra.mxu0 0
        %854 = vmatprep.subr.bf16.mxu0 0
        %855 = vmatpush1.bf16.msra.mxu0 0
        %856 = vmatprep.subr.bf16.mxu0 0
        %857 = vmatpush1.bf16.msra.mxu0 0
        %858 = vmatprep.subr.bf16.mxu0 0
        %859 = vmatpush1.bf16.msra.mxu0 0
        %860 = vmatprep.subr.bf16.mxu0 0
        %861 = vmatpush1.bf16.msra.mxu0 0
        %862 = vmatprep.subr.bf16.mxu0 0
        %863 = vmatpush1.bf16.msra.mxu0 0
        %864 = vmatprep.subr.bf16.mxu0 0
        %865 = vmatpush1.bf16.msra.mxu0 0
        %866 = vmatprep.subr.bf16.mxu0 0
        %867 = vmatpush1.bf16.msra.mxu0 0
        %868 = vmatprep.subr.bf16.mxu0 0
        %869 = vmatpush1.bf16.msra.mxu0 0
        %870 = vmatprep.subr.bf16.mxu0 0
        %871 = vmatpush1.bf16.msra.mxu0 0
        %872 = vmatprep.subr.bf16.mxu0 0
        %873 = vmatpush1.bf16.msra.mxu0 0
        %874 = vmatprep.subr.bf16.mxu0 0
        %875 = vmatpush1.bf16.msra.mxu0 0
        %876 = vmatprep.subr.bf16.mxu0 0
        %877 = vmatpush1.bf16.msra.mxu0 0
        %878 = vmatprep.subr.bf16.mxu0 0
        %879 = vmatpush1.bf16.msra.mxu0 0
        %880 = vmatprep.mubr.bf16.mxu0 0
        %881 = vmatmul.mubr.bf16.gmra.mrb[0].mxu0 %v477
        %v882 = vpop.f32.mrb[0].mxu0
        %v883 = vadd.f32 0.0, %v882
        %v884 = vpop.f32.mrb[0].mxu0
        %v885 = vpop.f32.mrb[0].mxu0
        %v886 = vpop.f32.mrb[0].mxu0
        %887 = vdwg.mxu0
        %v888 = vadd.f32 %v847, %v883
        %889 = vmatprep.subr.bf16.mxu0 0
        %890 = vmatpush1.bf16.msra.mxu0 %v602
        %891 = vmatprep.subr.bf16.mxu0 0
        %892 = vmatpush1.bf16.msra.mxu0 0
        %893 = vmatprep.subr.bf16.mxu0 0
        %894 = vmatpush1.bf16.msra.mxu0 0
        %895 = vmatprep.subr.bf16.mxu0 0
        %896 = vmatpush1.bf16.msra.mxu0 0
        %897 = vmatprep.subr.bf16.mxu0 0
        %898 = vmatpush1.bf16.msra.mxu0 0
        %899 = vmatprep.subr.bf16.mxu0 0
        %900 = vmatpush1.bf16.msra.mxu0 0
        %901 = vmatprep.subr.bf16.mxu0 0
        %902 = vmatpush1.bf16.msra.mxu0 0
        %903 = vmatprep.subr.bf16.mxu0 0
        %904 = vmatpush1.bf16.msra.mxu0 0
        %905 = vmatprep.subr.bf16.mxu0 0
        %906 = vmatpush1.bf16.msra.mxu0 0
        %907 = vmatprep.subr.bf16.mxu0 0
        %908 = vmatpush1.bf16.msra.mxu0 0
        %909 = vmatprep.subr.bf16.mxu0 0
        %910 = vmatpush1.bf16.msra.mxu0 0
        %911 = vmatprep.subr.bf16.mxu0 0
        %912 = vmatpush1.bf16.msra.mxu0 0
        %913 = vmatprep.subr.bf16.mxu0 0
        %914 = vmatpush1.bf16.msra.mxu0 0
        %915 = vmatprep.subr.bf16.mxu0 0
        %916 = vmatpush1.bf16.msra.mxu0 0
        %917 = vmatprep.subr.bf16.mxu0 0
        %918 = vmatpush1.bf16.msra.mxu0 0
        %919 = vmatprep.subr.bf16.mxu0 0
        %920 = vmatpush1.bf16.msra.mxu0 0
        %921 = vmatprep.mubr.bf16.mxu0 0
        %922 = vmatmul.mubr.bf16.gmra.mrb[0].mxu0 %v538
        %v923 = vpop.f32.mrb[0].mxu0
        %v924 = vadd.f32 0.0, %v923
        %v925 = vpop.f32.mrb[0].mxu0
        %v926 = vpop.f32.mrb[0].mxu0
        %v927 = vpop.f32.mrb[0].mxu0
        %928 = vdwg.mxu0
        %v929 = vadd.f32 %v888, %v924
        %930 = vrot.lane.b32.xlu0 %v407, 126
        %v931 = vpop.permute.xlu0 %930
        %932 = vrot.lane.b32.xlu0 %v408, 126
        %v933 = vpop.permute.xlu0 %932
        %vm934 = vcmask 1031168
        %v935 = vsel %vm934, %v931, %v933
        %v937 = vsel %vm216, %v935, 0
        %939 = vmatprep.subr.bf16.mxu0 0
        %940 = vmatpush1.bf16.msra.mxu0 %v937
        %941 = vmatprep.subr.bf16.mxu0 0
        %942 = vmatpush1.bf16.msra.mxu0 0
        %943 = vmatprep.subr.bf16.mxu0 0
        %944 = vmatpush1.bf16.msra.mxu0 0
        %945 = vmatprep.subr.bf16.mxu0 0
        %946 = vmatpush1.bf16.msra.mxu0 0
        %947 = vmatprep.subr.bf16.mxu0 0
        %948 = vmatpush1.bf16.msra.mxu0 0
        %949 = vmatprep.subr.bf16.mxu0 0
        %950 = vmatpush1.bf16.msra.mxu0 0
        %951 = vmatprep.subr.bf16.mxu0 0
        %952 = vmatpush1.bf16.msra.mxu0 0
        %953 = vmatprep.subr.bf16.mxu0 0
        %954 = vmatpush1.bf16.msra.mxu0 0
        %955 = vmatprep.subr.bf16.mxu0 0
        %956 = vmatpush1.bf16.msra.mxu0 0
        %957 = vmatprep.subr.bf16.mxu0 0
        %958 = vmatpush1.bf16.msra.mxu0 0
        %959 = vmatprep.subr.bf16.mxu0 0
        %960 = vmatpush1.bf16.msra.mxu0 0
        %961 = vmatprep.subr.bf16.mxu0 0
        %962 = vmatpush1.bf16.msra.mxu0 0
        %963 = vmatprep.subr.bf16.mxu0 0
        %964 = vmatpush1.bf16.msra.mxu0 0
        %965 = vmatprep.subr.bf16.mxu0 0
        %966 = vmatpush1.bf16.msra.mxu0 0
        %967 = vmatprep.subr.bf16.mxu0 0
        %968 = vmatpush1.bf16.msra.mxu0 0
        %969 = vmatprep.subr.bf16.mxu0 0
        %970 = vmatpush1.bf16.msra.mxu0 0
        %971 = vmatprep.mubr.bf16.mxu0 0
        %972 = vmatmul.mubr.bf16.gmra.mrb[0].mxu0 %v599
        %v973 = vpop.f32.mrb[0].mxu0
        %v974 = vadd.f32 0.0, %v973
        %v975 = vpop.f32.mrb[0].mxu0
        %v976 = vpop.f32.mrb[0].mxu0
        %v977 = vpop.f32.mrb[0].mxu0
        %978 = vdwg.mxu0
        %v979 = vadd.f32 %v929, %v974
        %v980 = vmax.f32 %v644, %v979
        %981 = vmatprep.subr.bf16.mxu0 0
        %982 = vmatpush1.bf16.msra.mxu0 %v357
        %983 = vmatprep.subr.bf16.mxu0 0
        %984 = vmatpush1.bf16.msra.mxu0 0
        %985 = vmatprep.subr.bf16.mxu0 0
        %986 = vmatpush1.bf16.msra.mxu0 0
        %987 = vmatprep.subr.bf16.mxu0 0
        %988 = vmatpush1.bf16.msra.mxu0 0
        %989 = vmatprep.subr.bf16.mxu0 0
        %990 = vmatpush1.bf16.msra.mxu0 0
        %991 = vmatprep.subr.bf16.mxu0 0
        %992 = vmatpush1.bf16.msra.mxu0 0
        %993 = vmatprep.subr.bf16.mxu0 0
        %994 = vmatpush1.bf16.msra.mxu0 0
        %995 = vmatprep.subr.bf16.mxu0 0
        %996 = vmatpush1.bf16.msra.mxu0 0
        %997 = vmatprep.subr.bf16.mxu0 0
        %998 = vmatpush1.bf16.msra.mxu0 0
        %999 = vmatprep.subr.bf16.mxu0 0
        %1000 = vmatpush1.bf16.msra.mxu0 0
        %1001 = vmatprep.subr.bf16.mxu0 0
        %1002 = vmatpush1.bf16.msra.mxu0 0
        %1003 = vmatprep.subr.bf16.mxu0 0
        %1004 = vmatpush1.bf16.msra.mxu0 0
        %1005 = vmatprep.subr.bf16.mxu0 0
        %1006 = vmatpush1.bf16.msra.mxu0 0
        %1007 = vmatprep.subr.bf16.mxu0 0
        %1008 = vmatpush1.bf16.msra.mxu0 0
        %1009 = vmatprep.subr.bf16.mxu0 0
        %1010 = vmatpush1.bf16.msra.mxu0 0
        %1011 = vmatprep.subr.bf16.mxu0 0
        %1012 = vmatpush1.bf16.msra.mxu0 0
        %1013 = vmatprep.mubr.bf16.mxu0 0
        %1014 = vmatmul.mubr.bf16.gmra.mrb[0].mxu0 %v214
        %v1015 = vpop.f32.mrb[0].mxu0
        %v1016 = vadd.f32 0.0, %v1015
        %v1017 = vpop.f32.mrb[0].mxu0
        %v1018 = vpop.f32.mrb[0].mxu0
        %v1019 = vpop.f32.mrb[0].mxu0
        %1020 = vdwg.mxu0
        %1021 = vmatprep.subr.bf16.mxu0 0
        %1022 = vmatpush1.bf16.msra.mxu0 %v310
        %1023 = vmatprep.subr.bf16.mxu0 0
        %1024 = vmatpush1.bf16.msra.mxu0 0
        %1025 = vmatprep.subr.bf16.mxu0 0
        %1026 = vmatpush1.bf16.msra.mxu0 0
        %1027 = vmatprep.subr.bf16.mxu0 0
        %1028 = vmatpush1.bf16.msra.mxu0 0
        %1029 = vmatprep.subr.bf16.mxu0 0
        %1030 = vmatpush1.bf16.msra.mxu0 0
        %1031 = vmatprep.subr.bf16.mxu0 0
        %1032 = vmatpush1.bf16.msra.mxu0 0
        %1033 = vmatprep.subr.bf16.mxu0 0
        %1034 = vmatpush1.bf16.msra.mxu0 0
        %1035 = vmatprep.subr.bf16.mxu0 0
        %1036 = vmatpush1.bf16.msra.mxu0 0
        %1037 = vmatprep.subr.bf16.mxu0 0
        %1038 = vmatpush1.bf16.msra.mxu0 0
        %1039 = vmatprep.subr.bf16.mxu0 0
        %1040 = vmatpush1.bf16.msra.mxu0 0
        %1041 = vmatprep.subr.bf16.mxu0 0
        %1042 = vmatpush1.bf16.msra.mxu0 0
        %1043 = vmatprep.subr.bf16.mxu0 0
        %1044 = vmatpush1.bf16.msra.mxu0 0
        %1045 = vmatprep.subr.bf16.mxu0 0
        %1046 = vmatpush1.bf16.msra.mxu0 0
        %1047 = vmatprep.subr.bf16.mxu0 0
        %1048 = vmatpush1.bf16.msra.mxu0 0
        %1049 = vmatprep.subr.bf16.mxu0 0
        %1050 = vmatpush1.bf16.msra.mxu0 0
        %1051 = vmatprep.subr.bf16.mxu0 0
        %1052 = vmatpush1.bf16.msra.mxu0 0
        %1053 = vmatprep.mubr.bf16.mxu0 0
        %1054 = vmatmul.mubr.bf16.gmra.mrb[0].mxu0 %v261
        %v1055 = vpop.f32.mrb[0].mxu0
        %v1056 = vadd.f32 %v1016, %v1055
        %v1057 = vpop.f32.mrb[0].mxu0
        %v1058 = vpop.f32.mrb[0].mxu0
        %v1059 = vpop.f32.mrb[0].mxu0
        %1060 = vdwg.mxu0
        %1061 = vmatprep.subr.bf16.mxu0 0
        %1062 = vmatpush1.bf16.msra.mxu0 %v419
        %1063 = vmatprep.subr.bf16.mxu0 0
        %1064 = vmatpush1.bf16.msra.mxu0 0
        %1065 = vmatprep.subr.bf16.mxu0 0
        %1066 = vmatpush1.bf16.msra.mxu0 0
        %1067 = vmatprep.subr.bf16.mxu0 0
        %1068 = vmatpush1.bf16.msra.mxu0 0
        %1069 = vmatprep.subr.bf16.mxu0 0
        %1070 = vmatpush1.bf16.msra.mxu0 0
        %1071 = vmatprep.subr.bf16.mxu0 0
        %1072 = vmatpush1.bf16.msra.mxu0 0
        %1073 = vmatprep.subr.bf16.mxu0 0
        %1074 = vmatpush1.bf16.msra.mxu0 0
        %1075 = vmatprep.subr.bf16.mxu0 0
        %1076 = vmatpush1.bf16.msra.mxu0 0
        %1077 = vmatprep.subr.bf16.mxu0 0
        %1078 = vmatpush1.bf16.msra.mxu0 0
        %1079 = vmatprep.subr.bf16.mxu0 0
        %1080 = vmatpush1.bf16.msra.mxu0 0
        %1081 = vmatprep.subr.bf16.mxu0 0
        %1082 = vmatpush1.bf16.msra.mxu0 0
        %1083 = vmatprep.subr.bf16.mxu0 0
        %1084 = vmatpush1.bf16.msra.mxu0 0
        %1085 = vmatprep.subr.bf16.mxu0 0
        %1086 = vmatpush1.bf16.msra.mxu0 0
        %1087 = vmatprep.subr.bf16.mxu0 0
        %1088 = vmatpush1.bf16.msra.mxu0 0
        %1089 = vmatprep.subr.bf16.mxu0 0
        %1090 = vmatpush1.bf16.msra.mxu0 0
        %1091 = vmatprep.subr.bf16.mxu0 0
        %1092 = vmatpush1.bf16.msra.mxu0 0
        %1093 = vmatprep.mubr.bf16.mxu0 0
        %1094 = vmatmul.mubr.bf16.gmra.mrb[0].mxu0 %v307
        %v1095 = vpop.f32.mrb[0].mxu0
        %v1096 = vadd.f32 0.0, %v1095
        %v1097 = vpop.f32.mrb[0].mxu0
        %v1098 = vpop.f32.mrb[0].mxu0
        %v1099 = vpop.f32.mrb[0].mxu0
        %1100 = vdwg.mxu0
        %v1101 = vadd.f32 %v1056, %v1096
        %1102 = vmatprep.subr.bf16.mxu0 0
        %1103 = vmatpush1.bf16.msra.mxu0 %v480
        %1104 = vmatprep.subr.bf16.mxu0 0
        %1105 = vmatpush1.bf16.msra.mxu0 0
        %1106 = vmatprep.subr.bf16.mxu0 0
        %1107 = vmatpush1.bf16.msra.mxu0 0
        %1108 = vmatprep.subr.bf16.mxu0 0
        %1109 = vmatpush1.bf16.msra.mxu0 0
        %1110 = vmatprep.subr.bf16.mxu0 0
        %1111 = vmatpush1.bf16.msra.mxu0 0
        %1112 = vmatprep.subr.bf16.mxu0 0
        %1113 = vmatpush1.bf16.msra.mxu0 0
        %1114 = vmatprep.subr.bf16.mxu0 0
        %1115 = vmatpush1.bf16.msra.mxu0 0
        %1116 = vmatprep.subr.bf16.mxu0 0
        %1117 = vmatpush1.bf16.msra.mxu0 0
        %1118 = vmatprep.subr.bf16.mxu0 0
        %1119 = vmatpush1.bf16.msra.mxu0 0
        %1120 = vmatprep.subr.bf16.mxu0 0
        %1121 = vmatpush1.bf16.msra.mxu0 0
        %1122 = vmatprep.subr.bf16.mxu0 0
        %1123 = vmatpush1.bf16.msra.mxu0 0
        %1124 = vmatprep.subr.bf16.mxu0 0
        %1125 = vmatpush1.bf16.msra.mxu0 0
        %1126 = vmatprep.subr.bf16.mxu0 0
        %1127 = vmatpush1.bf16.msra.mxu0 0
        %1128 = vmatprep.subr.bf16.mxu0 0
        %1129 = vmatpush1.bf16.msra.mxu0 0
        %1130 = vmatprep.subr.bf16.mxu0 0
        %1131 = vmatpush1.bf16.msra.mxu0 0
        %1132 = vmatprep.subr.bf16.mxu0 0
        %1133 = vmatpush1.bf16.msra.mxu0 0
        %1134 = vmatprep.mubr.bf16.mxu0 0
        %1135 = vmatmul.mubr.bf16.gmra.mrb[0].mxu0 %v354
        %v1136 = vpop.f32.mrb[0].mxu0
        %v1137 = vadd.f32 0.0, %v1136
        %v1138 = vpop.f32.mrb[0].mxu0
        %v1139 = vpop.f32.mrb[0].mxu0
        %v1140 = vpop.f32.mrb[0].mxu0
        %1141 = vdwg.mxu0
        %v1142 = vadd.f32 %v1101, %v1137
        %1143 = vmatprep.subr.bf16.mxu0 0
        %1144 = vmatpush1.bf16.msra.mxu0 %v541
        %1145 = vmatprep.subr.bf16.mxu0 0
        %1146 = vmatpush1.bf16.msra.mxu0 0
        %1147 = vmatprep.subr.bf16.mxu0 0
        %1148 = vmatpush1.bf16.msra.mxu0 0
        %1149 = vmatprep.subr.bf16.mxu0 0
        %1150 = vmatpush1.bf16.msra.mxu0 0
        %1151 = vmatprep.subr.bf16.mxu0 0
        %1152 = vmatpush1.bf16.msra.mxu0 0
        %1153 = vmatprep.subr.bf16.mxu0 0
        %1154 = vmatpush1.bf16.msra.mxu0 0
        %1155 = vmatprep.subr.bf16.mxu0 0
        %1156 = vmatpush1.bf16.msra.mxu0 0
        %1157 = vmatprep.subr.bf16.mxu0 0
        %1158 = vmatpush1.bf16.msra.mxu0 0
        %1159 = vmatprep.subr.bf16.mxu0 0
        %1160 = vmatpush1.bf16.msra.mxu0 0
        %1161 = vmatprep.subr.bf16.mxu0 0
        %1162 = vmatpush1.bf16.msra.mxu0 0
        %1163 = vmatprep.subr.bf16.mxu0 0
        %1164 = vmatpush1.bf16.msra.mxu0 0
        %1165 = vmatprep.subr.bf16.mxu0 0
        %1166 = vmatpush1.bf16.msra.mxu0 0
        %1167 = vmatprep.subr.bf16.mxu0 0
        %1168 = vmatpush1.bf16.msra.mxu0 0
        %1169 = vmatprep.subr.bf16.mxu0 0
        %1170 = vmatpush1.bf16.msra.mxu0 0
        %1171 = vmatprep.subr.bf16.mxu0 0
        %1172 = vmatpush1.bf16.msra.mxu0 0
        %1173 = vmatprep.subr.bf16.mxu0 0
        %1174 = vmatpush1.bf16.msra.mxu0 0
        %1175 = vmatprep.mubr.bf16.mxu0 0
        %1176 = vmatmul.mubr.bf16.gmra.mrb[0].mxu0 %v416
        %v1177 = vpop.f32.mrb[0].mxu0
        %v1178 = vadd.f32 0.0, %v1177
        %v1179 = vpop.f32.mrb[0].mxu0
        %v1180 = vpop.f32.mrb[0].mxu0
        %v1181 = vpop.f32.mrb[0].mxu0
        %1182 = vdwg.mxu0
        %v1183 = vadd.f32 %v1142, %v1178
        %1184 = vmatprep.subr.bf16.mxu0 0
        %1185 = vmatpush1.bf16.msra.mxu0 %v602
        %1186 = vmatprep.subr.bf16.mxu0 0
        %1187 = vmatpush1.bf16.msra.mxu0 0
        %1188 = vmatprep.subr.bf16.mxu0 0
        %1189 = vmatpush1.bf16.msra.mxu0 0
        %1190 = vmatprep.subr.bf16.mxu0 0
        %1191 = vmatpush1.bf16.msra.mxu0 0
        %1192 = vmatprep.subr.bf16.mxu0 0
        %1193 = vmatpush1.bf16.msra.mxu0 0
        %1194 = vmatprep.subr.bf16.mxu0 0
        %1195 = vmatpush1.bf16.msra.mxu0 0
        %1196 = vmatprep.subr.bf16.mxu0 0
        %1197 = vmatpush1.bf16.msra.mxu0 0
        %1198 = vmatprep.subr.bf16.mxu0 0
        %1199 = vmatpush1.bf16.msra.mxu0 0
        %1200 = vmatprep.subr.bf16.mxu0 0
        %1201 = vmatpush1.bf16.msra.mxu0 0
        %1202 = vmatprep.subr.bf16.mxu0 0
        %1203 = vmatpush1.bf16.msra.mxu0 0
        %1204 = vmatprep.subr.bf16.mxu0 0
        %1205 = vmatpush1.bf16.msra.mxu0 0
        %1206 = vmatprep.subr.bf16.mxu0 0
        %1207 = vmatpush1.bf16.msra.mxu0 0
        %1208 = vmatprep.subr.bf16.mxu0 0
        %1209 = vmatpush1.bf16.msra.mxu0 0
        %1210 = vmatprep.subr.bf16.mxu0 0
        %1211 = vmatpush1.bf16.msra.mxu0 0
        %1212 = vmatprep.subr.bf16.mxu0 0
        %1213 = vmatpush1.bf16.msra.mxu0 0
        %1214 = vmatprep.subr.bf16.mxu0 0
        %1215 = vmatpush1.bf16.msra.mxu0 0
        %1216 = vmatprep.mubr.bf16.mxu0 0
        %1217 = vmatmul.mubr.bf16.gmra.mrb[0].mxu0 %v477
        %v1218 = vpop.f32.mrb[0].mxu0
        %v1219 = vadd.f32 0.0, %v1218
        %v1220 = vpop.f32.mrb[0].mxu0
        %v1221 = vpop.f32.mrb[0].mxu0
        %v1222 = vpop.f32.mrb[0].mxu0
        %1223 = vdwg.mxu0
        %v1224 = vadd.f32 %v1183, %v1219
        %1225 = vmatprep.subr.bf16.mxu0 0
        %1226 = vmatpush1.bf16.msra.mxu0 %v937
        %1227 = vmatprep.subr.bf16.mxu0 0
        %1228 = vmatpush1.bf16.msra.mxu0 0
        %1229 = vmatprep.subr.bf16.mxu0 0
        %1230 = vmatpush1.bf16.msra.mxu0 0
        %1231 = vmatprep.subr.bf16.mxu0 0
        %1232 = vmatpush1.bf16.msra.mxu0 0
        %1233 = vmatprep.subr.bf16.mxu0 0
        %1234 = vmatpush1.bf16.msra.mxu0 0
        %1235 = vmatprep.subr.bf16.mxu0 0
        %1236 = vmatpush1.bf16.msra.mxu0 0
        %1237 = vmatprep.subr.bf16.mxu0 0
        %1238 = vmatpush1.bf16.msra.mxu0 0
        %1239 = vmatprep.subr.bf16.mxu0 0
        %1240 = vmatpush1.bf16.msra.mxu0 0
        %1241 = vmatprep.subr.bf16.mxu0 0
        %1242 = vmatpush1.bf16.msra.mxu0 0
        %1243 = vmatprep.subr.bf16.mxu0 0
        %1244 = vmatpush1.bf16.msra.mxu0 0
        %1245 = vmatprep.subr.bf16.mxu0 0
        %1246 = vmatpush1.bf16.msra.mxu0 0
        %1247 = vmatprep.subr.bf16.mxu0 0
        %1248 = vmatpush1.bf16.msra.mxu0 0
        %1249 = vmatprep.subr.bf16.mxu0 0
        %1250 = vmatpush1.bf16.msra.mxu0 0
        %1251 = vmatprep.subr.bf16.mxu0 0
        %1252 = vmatpush1.bf16.msra.mxu0 0
        %1253 = vmatprep.subr.bf16.mxu0 0
        %1254 = vmatpush1.bf16.msra.mxu0 0
        %1255 = vmatprep.subr.bf16.mxu0 0
        %1256 = vmatpush1.bf16.msra.mxu0 0
        %1257 = vmatprep.mubr.bf16.mxu0 0
        %1258 = vmatmul.mubr.bf16.gmra.mrb[0].mxu0 %v538
        %v1259 = vpop.f32.mrb[0].mxu0
        %v1260 = vadd.f32 0.0, %v1259
        %v1261 = vpop.f32.mrb[0].mxu0
        %v1262 = vpop.f32.mrb[0].mxu0
        %v1263 = vpop.f32.mrb[0].mxu0
        %1264 = vdwg.mxu0
        %v1265 = vadd.f32 %v1224, %v1260
        %1266 = vrot.lane.b32.xlu0 %v469, 126
        %v1267 = vpop.permute.xlu0 %1266
        %1268 = vrot.lane.b32.xlu0 %v470, 126
        %v1269 = vpop.permute.xlu0 %1268
        %v1270 = vsel %vm934, %v1267, %v1269
        %v1272 = vsel %vm216, %v1270, 0
        %1274 = vmatprep.subr.bf16.mxu0 0
        %1275 = vmatpush1.bf16.msra.mxu0 %v1272
        %1276 = vmatprep.subr.bf16.mxu0 0
        %1277 = vmatpush1.bf16.msra.mxu0 0
        %1278 = vmatprep.subr.bf16.mxu0 0
        %1279 = vmatpush1.bf16.msra.mxu0 0
        %1280 = vmatprep.subr.bf16.mxu0 0
        %1281 = vmatpush1.bf16.msra.mxu0 0
        %1282 = vmatprep.subr.bf16.mxu0 0
        %1283 = vmatpush1.bf16.msra.mxu0 0
        %1284 = vmatprep.subr.bf16.mxu0 0
        %1285 = vmatpush1.bf16.msra.mxu0 0
        %1286 = vmatprep.subr.bf16.mxu0 0
        %1287 = vmatpush1.bf16.msra.mxu0 0
        %1288 = vmatprep.subr.bf16.mxu0 0
        %1289 = vmatpush1.bf16.msra.mxu0 0
        %1290 = vmatprep.subr.bf16.mxu0 0
        %1291 = vmatpush1.bf16.msra.mxu0 0
        %1292 = vmatprep.subr.bf16.mxu0 0
        %1293 = vmatpush1.bf16.msra.mxu0 0
        %1294 = vmatprep.subr.bf16.mxu0 0
        %1295 = vmatpush1.bf16.msra.mxu0 0
        %1296 = vmatprep.subr.bf16.mxu0 0
        %1297 = vmatpush1.bf16.msra.mxu0 0
        %1298 = vmatprep.subr.bf16.mxu0 0
        %1299 = vmatpush1.bf16.msra.mxu0 0
        %1300 = vmatprep.subr.bf16.mxu0 0
        %1301 = vmatpush1.bf16.msra.mxu0 0
        %1302 = vmatprep.subr.bf16.mxu0 0
        %1303 = vmatpush1.bf16.msra.mxu0 0
        %1304 = vmatprep.subr.bf16.mxu0 0
        %1305 = vmatpush1.bf16.msra.mxu0 0
        %1306 = vmatprep.mubr.bf16.mxu0 0
        %1307 = vmatmul.mubr.bf16.gmra.mrb[0].mxu0 %v599
        %v1308 = vpop.f32.mrb[0].mxu0
        %v1309 = vadd.f32 0.0, %v1308
        %v1310 = vpop.f32.mrb[0].mxu0
        %v1311 = vpop.f32.mrb[0].mxu0
        %v1312 = vpop.f32.mrb[0].mxu0
        %1313 = vdwg.mxu0
        %v1314 = vadd.f32 %v1265, %v1309
        %v1315 = vmax.f32 %v980, %v1314
        %1316 = vmatprep.subr.bf16.mxu0 0
        %1317 = vmatpush1.bf16.msra.mxu0 %v419
        %1318 = vmatprep.subr.bf16.mxu0 0
        %1319 = vmatpush1.bf16.msra.mxu0 0
        %1320 = vmatprep.subr.bf16.mxu0 0
        %1321 = vmatpush1.bf16.msra.mxu0 0
        %1322 = vmatprep.subr.bf16.mxu0 0
        %1323 = vmatpush1.bf16.msra.mxu0 0
        %1324 = vmatprep.subr.bf16.mxu0 0
        %1325 = vmatpush1.bf16.msra.mxu0 0
        %1326 = vmatprep.subr.bf16.mxu0 0
        %1327 = vmatpush1.bf16.msra.mxu0 0
        %1328 = vmatprep.subr.bf16.mxu0 0
        %1329 = vmatpush1.bf16.msra.mxu0 0
        %1330 = vmatprep.subr.bf16.mxu0 0
        %1331 = vmatpush1.bf16.msra.mxu0 0
        %1332 = vmatprep.subr.bf16.mxu0 0
        %1333 = vmatpush1.bf16.msra.mxu0 0
        %1334 = vmatprep.subr.bf16.mxu0 0
        %1335 = vmatpush1.bf16.msra.mxu0 0
        %1336 = vmatprep.subr.bf16.mxu0 0
        %1337 = vmatpush1.bf16.msra.mxu0 0
        %1338 = vmatprep.subr.bf16.mxu0 0
        %1339 = vmatpush1.bf16.msra.mxu0 0
        %1340 = vmatprep.subr.bf16.mxu0 0
        %1341 = vmatpush1.bf16.msra.mxu0 0
        %1342 = vmatprep.subr.bf16.mxu0 0
        %1343 = vmatpush1.bf16.msra.mxu0 0
        %1344 = vmatprep.subr.bf16.mxu0 0
        %1345 = vmatpush1.bf16.msra.mxu0 0
        %1346 = vmatprep.subr.bf16.mxu0 0
        %1347 = vmatpush1.bf16.msra.mxu0 0
        %1348 = vmatprep.mubr.bf16.mxu0 0
        %1349 = vmatmul.mubr.bf16.gmra.mrb[0].mxu0 %v214
        %v1350 = vpop.f32.mrb[0].mxu0
        %v1351 = vadd.f32 0.0, %v1350
        %v1352 = vpop.f32.mrb[0].mxu0
        %v1353 = vpop.f32.mrb[0].mxu0
        %v1354 = vpop.f32.mrb[0].mxu0
        %1355 = vdwg.mxu0
        %1356 = vmatprep.subr.bf16.mxu0 0
        %1357 = vmatpush1.bf16.msra.mxu0 %v357
        %1358 = vmatprep.subr.bf16.mxu0 0
        %1359 = vmatpush1.bf16.msra.mxu0 0
        %1360 = vmatprep.subr.bf16.mxu0 0
        %1361 = vmatpush1.bf16.msra.mxu0 0
        %1362 = vmatprep.subr.bf16.mxu0 0
        %1363 = vmatpush1.bf16.msra.mxu0 0
        %1364 = vmatprep.subr.bf16.mxu0 0
        %1365 = vmatpush1.bf16.msra.mxu0 0
        %1366 = vmatprep.subr.bf16.mxu0 0
        %1367 = vmatpush1.bf16.msra.mxu0 0
        %1368 = vmatprep.subr.bf16.mxu0 0
        %1369 = vmatpush1.bf16.msra.mxu0 0
        %1370 = vmatprep.subr.bf16.mxu0 0
        %1371 = vmatpush1.bf16.msra.mxu0 0
        %1372 = vmatprep.subr.bf16.mxu0 0
        %1373 = vmatpush1.bf16.msra.mxu0 0
        %1374 = vmatprep.subr.bf16.mxu0 0
        %1375 = vmatpush1.bf16.msra.mxu0 0
        %1376 = vmatprep.subr.bf16.mxu0 0
        %1377 = vmatpush1.bf16.msra.mxu0 0
        %1378 = vmatprep.subr.bf16.mxu0 0
        %1379 = vmatpush1.bf16.msra.mxu0 0
        %1380 = vmatprep.subr.bf16.mxu0 0
        %1381 = vmatpush1.bf16.msra.mxu0 0
        %1382 = vmatprep.subr.bf16.mxu0 0
        %1383 = vmatpush1.bf16.msra.mxu0 0
        %1384 = vmatprep.subr.bf16.mxu0 0
        %1385 = vmatpush1.bf16.msra.mxu0 0
        %1386 = vmatprep.subr.bf16.mxu0 0
        %1387 = vmatpush1.bf16.msra.mxu0 0
        %1388 = vmatprep.mubr.bf16.mxu0 0
        %1389 = vmatmul.mubr.bf16.gmra.mrb[0].mxu0 %v261
        %v1390 = vpop.f32.mrb[0].mxu0
        %v1391 = vadd.f32 %v1351, %v1390
        %v1392 = vpop.f32.mrb[0].mxu0
        %v1393 = vpop.f32.mrb[0].mxu0
        %v1394 = vpop.f32.mrb[0].mxu0
        %1395 = vdwg.mxu0
        %1396 = vmatprep.subr.bf16.mxu0 0
        %1397 = vmatpush1.bf16.msra.mxu0 %v480
        %1398 = vmatprep.subr.bf16.mxu0 0
        %1399 = vmatpush1.bf16.msra.mxu0 0
        %1400 = vmatprep.subr.bf16.mxu0 0
        %1401 = vmatpush1.bf16.msra.mxu0 0
        %1402 = vmatprep.subr.bf16.mxu0 0
        %1403 = vmatpush1.bf16.msra.mxu0 0
        %1404 = vmatprep.subr.bf16.mxu0 0
        %1405 = vmatpush1.bf16.msra.mxu0 0
        %1406 = vmatprep.subr.bf16.mxu0 0
        %1407 = vmatpush1.bf16.msra.mxu0 0
        %1408 = vmatprep.subr.bf16.mxu0 0
        %1409 = vmatpush1.bf16.msra.mxu0 0
        %1410 = vmatprep.subr.bf16.mxu0 0
        %1411 = vmatpush1.bf16.msra.mxu0 0
        %1412 = vmatprep.subr.bf16.mxu0 0
        %1413 = vmatpush1.bf16.msra.mxu0 0
        %1414 = vmatprep.subr.bf16.mxu0 0
        %1415 = vmatpush1.bf16.msra.mxu0 0
        %1416 = vmatprep.subr.bf16.mxu0 0
        %1417 = vmatpush1.bf16.msra.mxu0 0
        %1418 = vmatprep.subr.bf16.mxu0 0
        %1419 = vmatpush1.bf16.msra.mxu0 0
        %1420 = vmatprep.subr.bf16.mxu0 0
        %1421 = vmatpush1.bf16.msra.mxu0 0
        %1422 = vmatprep.subr.bf16.mxu0 0
        %1423 = vmatpush1.bf16.msra.mxu0 0
        %1424 = vmatprep.subr.bf16.mxu0 0
        %1425 = vmatpush1.bf16.msra.mxu0 0
        %1426 = vmatprep.subr.bf16.mxu0 0
        %1427 = vmatpush1.bf16.msra.mxu0 0
        %1428 = vmatprep.mubr.bf16.mxu0 0
        %1429 = vmatmul.mubr.bf16.gmra.mrb[0].mxu0 %v307
        %v1430 = vpop.f32.mrb[0].mxu0
        %v1431 = vadd.f32 0.0, %v1430
        %v1432 = vpop.f32.mrb[0].mxu0
        %v1433 = vpop.f32.mrb[0].mxu0
        %v1434 = vpop.f32.mrb[0].mxu0
        %1435 = vdwg.mxu0
        %v1436 = vadd.f32 %v1391, %v1431
        %1437 = vmatprep.subr.bf16.mxu0 0
        %1438 = vmatpush1.bf16.msra.mxu0 %v541
        %1439 = vmatprep.subr.bf16.mxu0 0
        %1440 = vmatpush1.bf16.msra.mxu0 0
        %1441 = vmatprep.subr.bf16.mxu0 0
        %1442 = vmatpush1.bf16.msra.mxu0 0
        %1443 = vmatprep.subr.bf16.mxu0 0
        %1444 = vmatpush1.bf16.msra.mxu0 0
        %1445 = vmatprep.subr.bf16.mxu0 0
        %1446 = vmatpush1.bf16.msra.mxu0 0
        %1447 = vmatprep.subr.bf16.mxu0 0
        %1448 = vmatpush1.bf16.msra.mxu0 0
        %1449 = vmatprep.subr.bf16.mxu0 0
        %1450 = vmatpush1.bf16.msra.mxu0 0
        %1451 = vmatprep.subr.bf16.mxu0 0
        %1452 = vmatpush1.bf16.msra.mxu0 0
        %1453 = vmatprep.subr.bf16.mxu0 0
        %1454 = vmatpush1.bf16.msra.mxu0 0
        %1455 = vmatprep.subr.bf16.mxu0 0
        %1456 = vmatpush1.bf16.msra.mxu0 0
        %1457 = vmatprep.subr.bf16.mxu0 0
        %1458 = vmatpush1.bf16.msra.mxu0 0
        %1459 = vmatprep.subr.bf16.mxu0 0
        %1460 = vmatpush1.bf16.msra.mxu0 0
        %1461 = vmatprep.subr.bf16.mxu0 0
        %1462 = vmatpush1.bf16.msra.mxu0 0
        %1463 = vmatprep.subr.bf16.mxu0 0
        %1464 = vmatpush1.bf16.msra.mxu0 0
        %1465 = vmatprep.subr.bf16.mxu0 0
        %1466 = vmatpush1.bf16.msra.mxu0 0
        %1467 = vmatprep.subr.bf16.mxu0 0
        %1468 = vmatpush1.bf16.msra.mxu0 0
        %1469 = vmatprep.mubr.bf16.mxu0 0
        %1470 = vmatmul.mubr.bf16.gmra.mrb[0].mxu0 %v354
        %v1471 = vpop.f32.mrb[0].mxu0
        %v1472 = vadd.f32 0.0, %v1471
        %v1473 = vpop.f32.mrb[0].mxu0
        %v1474 = vpop.f32.mrb[0].mxu0
        %v1475 = vpop.f32.mrb[0].mxu0
        %1476 = vdwg.mxu0
        %v1477 = vadd.f32 %v1436, %v1472
        %1478 = vmatprep.subr.bf16.mxu0 0
        %1479 = vmatpush1.bf16.msra.mxu0 %v602
        %1480 = vmatprep.subr.bf16.mxu0 0
        %1481 = vmatpush1.bf16.msra.mxu0 0
        %1482 = vmatprep.subr.bf16.mxu0 0
        %1483 = vmatpush1.bf16.msra.mxu0 0
        %1484 = vmatprep.subr.bf16.mxu0 0
        %1485 = vmatpush1.bf16.msra.mxu0 0
        %1486 = vmatprep.subr.bf16.mxu0 0
        %1487 = vmatpush1.bf16.msra.mxu0 0
        %1488 = vmatprep.subr.bf16.mxu0 0
        %1489 = vmatpush1.bf16.msra.mxu0 0
        %1490 = vmatprep.subr.bf16.mxu0 0
        %1491 = vmatpush1.bf16.msra.mxu0 0
        %1492 = vmatprep.subr.bf16.mxu0 0
        %1493 = vmatpush1.bf16.msra.mxu0 0
        %1494 = vmatprep.subr.bf16.mxu0 0
        %1495 = vmatpush1.bf16.msra.mxu0 0
        %1496 = vmatprep.subr.bf16.mxu0 0
        %1497 = vmatpush1.bf16.msra.mxu0 0
        %1498 = vmatprep.subr.bf16.mxu0 0
        %1499 = vmatpush1.bf16.msra.mxu0 0
        %1500 = vmatprep.subr.bf16.mxu0 0
        %1501 = vmatpush1.bf16.msra.mxu0 0
        %1502 = vmatprep.subr.bf16.mxu0 0
        %1503 = vmatpush1.bf16.msra.mxu0 0
        %1504 = vmatprep.subr.bf16.mxu0 0
        %1505 = vmatpush1.bf16.msra.mxu0 0
        %1506 = vmatprep.subr.bf16.mxu0 0
        %1507 = vmatpush1.bf16.msra.mxu0 0
        %1508 = vmatprep.subr.bf16.mxu0 0
        %1509 = vmatpush1.bf16.msra.mxu0 0
        %1510 = vmatprep.mubr.bf16.mxu0 0
        %1511 = vmatmul.mubr.bf16.gmra.mrb[0].mxu0 %v416
        %v1512 = vpop.f32.mrb[0].mxu0
        %v1513 = vadd.f32 0.0, %v1512
        %v1514 = vpop.f32.mrb[0].mxu0
        %v1515 = vpop.f32.mrb[0].mxu0
        %v1516 = vpop.f32.mrb[0].mxu0
        %1517 = vdwg.mxu0
        %v1518 = vadd.f32 %v1477, %v1513
        %1519 = vmatprep.subr.bf16.mxu0 0
        %1520 = vmatpush1.bf16.msra.mxu0 %v937
        %1521 = vmatprep.subr.bf16.mxu0 0
        %1522 = vmatpush1.bf16.msra.mxu0 0
        %1523 = vmatprep.subr.bf16.mxu0 0
        %1524 = vmatpush1.bf16.msra.mxu0 0
        %1525 = vmatprep.subr.bf16.mxu0 0
        %1526 = vmatpush1.bf16.msra.mxu0 0
        %1527 = vmatprep.subr.bf16.mxu0 0
        %1528 = vmatpush1.bf16.msra.mxu0 0
        %1529 = vmatprep.subr.bf16.mxu0 0
        %1530 = vmatpush1.bf16.msra.mxu0 0
        %1531 = vmatprep.subr.bf16.mxu0 0
        %1532 = vmatpush1.bf16.msra.mxu0 0
        %1533 = vmatprep.subr.bf16.mxu0 0
        %1534 = vmatpush1.bf16.msra.mxu0 0
        %1535 = vmatprep.subr.bf16.mxu0 0
        %1536 = vmatpush1.bf16.msra.mxu0 0
        %1537 = vmatprep.subr.bf16.mxu0 0
        %1538 = vmatpush1.bf16.msra.mxu0 0
        %1539 = vmatprep.subr.bf16.mxu0 0
        %1540 = vmatpush1.bf16.msra.mxu0 0
        %1541 = vmatprep.subr.bf16.mxu0 0
        %1542 = vmatpush1.bf16.msra.mxu0 0
        %1543 = vmatprep.subr.bf16.mxu0 0
        %1544 = vmatpush1.bf16.msra.mxu0 0
        %1545 = vmatprep.subr.bf16.mxu0 0
        %1546 = vmatpush1.bf16.msra.mxu0 0
        %1547 = vmatprep.subr.bf16.mxu0 0
        %1548 = vmatpush1.bf16.msra.mxu0 0
        %1549 = vmatprep.subr.bf16.mxu0 0
        %1550 = vmatpush1.bf16.msra.mxu0 0
        %1551 = vmatprep.mubr.bf16.mxu0 0
        %1552 = vmatmul.mubr.bf16.gmra.mrb[0].mxu0 %v477
        %v1553 = vpop.f32.mrb[0].mxu0
        %v1554 = vadd.f32 0.0, %v1553
        %v1555 = vpop.f32.mrb[0].mxu0
        %v1556 = vpop.f32.mrb[0].mxu0
        %v1557 = vpop.f32.mrb[0].mxu0
        %1558 = vdwg.mxu0
        %v1559 = vadd.f32 %v1518, %v1554
        %1560 = vmatprep.subr.bf16.mxu0 0
        %1561 = vmatpush1.bf16.msra.mxu0 %v1272
        %1562 = vmatprep.subr.bf16.mxu0 0
        %1563 = vmatpush1.bf16.msra.mxu0 0
        %1564 = vmatprep.subr.bf16.mxu0 0
        %1565 = vmatpush1.bf16.msra.mxu0 0
        %1566 = vmatprep.subr.bf16.mxu0 0
        %1567 = vmatpush1.bf16.msra.mxu0 0
        %1568 = vmatprep.subr.bf16.mxu0 0
        %1569 = vmatpush1.bf16.msra.mxu0 0
        %1570 = vmatprep.subr.bf16.mxu0 0
        %1571 = vmatpush1.bf16.msra.mxu0 0
        %1572 = vmatprep.subr.bf16.mxu0 0
        %1573 = vmatpush1.bf16.msra.mxu0 0
        %1574 = vmatprep.subr.bf16.mxu0 0
        %1575 = vmatpush1.bf16.msra.mxu0 0
        %1576 = vmatprep.subr.bf16.mxu0 0
        %1577 = vmatpush1.bf16.msra.mxu0 0
        %1578 = vmatprep.subr.bf16.mxu0 0
        %1579 = vmatpush1.bf16.msra.mxu0 0
        %1580 = vmatprep.subr.bf16.mxu0 0
        %1581 = vmatpush1.bf16.msra.mxu0 0
        %1582 = vmatprep.subr.bf16.mxu0 0
        %1583 = vmatpush1.bf16.msra.mxu0 0
        %1584 = vmatprep.subr.bf16.mxu0 0
        %1585 = vmatpush1.bf16.msra.mxu0 0
        %1586 = vmatprep.subr.bf16.mxu0 0
        %1587 = vmatpush1.bf16.msra.mxu0 0
        %1588 = vmatprep.subr.bf16.mxu0 0
        %1589 = vmatpush1.bf16.msra.mxu0 0
        %1590 = vmatprep.subr.bf16.mxu0 0
        %1591 = vmatpush1.bf16.msra.mxu0 0
        %1592 = vmatprep.mubr.bf16.mxu0 0
        %1593 = vmatmul.mubr.bf16.gmra.mrb[0].mxu0 %v538
        %v1594 = vpop.f32.mrb[0].mxu0
        %v1595 = vadd.f32 0.0, %v1594
        %v1596 = vpop.f32.mrb[0].mxu0
        %v1597 = vpop.f32.mrb[0].mxu0
        %v1598 = vpop.f32.mrb[0].mxu0
        %1599 = vdwg.mxu0
        %v1600 = vadd.f32 %v1559, %v1595
        %1601 = vrot.lane.b32.xlu0 %v530, 126
        %v1602 = vpop.permute.xlu0 %1601
        %1603 = vrot.lane.b32.xlu0 %v531, 126
        %v1604 = vpop.permute.xlu0 %1603
        %v1605 = vsel %vm934, %v1602, %v1604
        %v1607 = vsel %vm216, %v1605, 0
        %1609 = vmatprep.subr.bf16.mxu0 0
        %1610 = vmatpush1.bf16.msra.mxu0 %v1607
        %1611 = vmatprep.subr.bf16.mxu0 0
        %1612 = vmatpush1.bf16.msra.mxu0 0
        %1613 = vmatprep.subr.bf16.mxu0 0
        %1614 = vmatpush1.bf16.msra.mxu0 0
        %1615 = vmatprep.subr.bf16.mxu0 0
        %1616 = vmatpush1.bf16.msra.mxu0 0
        %1617 = vmatprep.subr.bf16.mxu0 0
        %1618 = vmatpush1.bf16.msra.mxu0 0
        %1619 = vmatprep.subr.bf16.mxu0 0
        %1620 = vmatpush1.bf16.msra.mxu0 0
        %1621 = vmatprep.subr.bf16.mxu0 0
        %1622 = vmatpush1.bf16.msra.mxu0 0
        %1623 = vmatprep.subr.bf16.mxu0 0
        %1624 = vmatpush1.bf16.msra.mxu0 0
        %1625 = vmatprep.subr.bf16.mxu0 0
        %1626 = vmatpush1.bf16.msra.mxu0 0
        %1627 = vmatprep.subr.bf16.mxu0 0
        %1628 = vmatpush1.bf16.msra.mxu0 0
        %1629 = vmatprep.subr.bf16.mxu0 0
        %1630 = vmatpush1.bf16.msra.mxu0 0
        %1631 = vmatprep.subr.bf16.mxu0 0
        %1632 = vmatpush1.bf16.msra.mxu0 0
        %1633 = vmatprep.subr.bf16.mxu0 0
        %1634 = vmatpush1.bf16.msra.mxu0 0
        %1635 = vmatprep.subr.bf16.mxu0 0
        %1636 = vmatpush1.bf16.msra.mxu0 0
        %1637 = vmatprep.subr.bf16.mxu0 0
        %1638 = vmatpush1.bf16.msra.mxu0 0
        %1639 = vmatprep.subr.bf16.mxu0 0
        %1640 = vmatpush1.bf16.msra.mxu0 0
        %1641 = vmatprep.mubr.bf16.mxu0 0
        %1642 = vmatmul.mubr.bf16.gmra.mrb[0].mxu0 %v599
        %v1643 = vpop.f32.mrb[0].mxu0
        %v1644 = vadd.f32 0.0, %v1643
        %v1645 = vpop.f32.mrb[0].mxu0
        %v1646 = vpop.f32.mrb[0].mxu0
        %v1647 = vpop.f32.mrb[0].mxu0
        %1648 = vdwg.mxu0
        %v1649 = vadd.f32 %v1600, %v1644
        %v1650 = vmax.f32 %v1315, %v1649
        %v1651 = vld [vmem:[%s1] sm:$0xff]
        %1653 = vset.pattern.permute.xlu0 0
        %1654 = vperm.xlu0 %1653, %v1651
        %v1655 = vpop.permute.xlu0 %1654
        %v1657 = vadd.f32 %v1650, %v1655
        %v1658 = vmax.f32 %v1657, 0.0
        %1659 = vst [vmem:[%s188] sm:$0xff] %v1658
        %s1660 = sand.u32 %s96, 1
        %s1661 = scalar_lea.sflag [#allocation4], %s1660
        %s1662 = sand.u32 %s96, 1
        %s1663 = smul.addr %s1662, 8
        %s1664 = scalar_lea.vmem [#allocation5], %s1663
        // Predicated region
        $region37: #{tpu_custom_call.1} parent=31 // pred_check
          %p1665 = pneg %p106
        $region38: #{tpu_custom_call.1} parent=31 // pred_check_branch
          %1667 = sbr.rel (%p1665) target = $region40
        $region39: #{tpu_custom_call.1} parent=31 // pred_region
          %s1669 = ssub.s32 128, 128
          %1670 = vsyncadd %s1661, %s1669
          %s1671 = smul.addr %s20, 128
          %s1672 = scalar_lea.hbm %s3, %s1671
          %s1674 = sshll.u32 %s1664, 4
          %s1675 = int_to_ptr.vmem [resolvable:$true] %s1674
          %1677 = dma.vmem_to_hbm [thread:$0]  %s1675, 128, %s1672, %s1661
        $region40: #{tpu_custom_call.1} parent=31 // pred_fallthru
          _
      $region32: #{tpu_custom_call.1} parent=5 // pred_fallthru
        _
      %p1678 = scmp.le.s32.totalorder 2, %s15
      // Predicated region
      $region41: #{tpu_custom_call.1} parent=5 // pred_check
        %p1679 = pneg %p1678
      $region42: #{tpu_custom_call.1} parent=5 // pred_check_branch
        %1681 = sbr.rel (%p1679) target = $region44
      $region43: #{tpu_custom_call.1} parent=5 // pred_region
        %s1682 = ssub.s32 %s15, 2
        // Predicated region
        $region45: #{tpu_custom_call.1} parent=43 // pred_check
          %p1683 = pneg %p112
        $region46: #{tpu_custom_call.1} parent=43 // pred_check_branch
          %1685 = sbr.rel (%p1683) target = $region48
        $region47: #{tpu_custom_call.1} parent=43 // pred_region
          %s1686 = sand.u32 %s97, 1
          %s1687 = scalar_lea.sflag [#allocation4], %s1686
          %s1688 = sand.u32 %s97, 1
          %s1689 = smul.addr %s1688, 8
          %s1690 = scalar_lea.vmem [#allocation5], %s1689
          %1691 = dma.done %s1687, 128
        $region48: #{tpu_custom_call.1} parent=43 // pred_fallthru
          _
      $region44: #{tpu_custom_call.1} parent=5 // pred_fallthru
        _
    $region6: #{tpu_custom_call.1} parent=1 // loop_footer
      %s19 = sadd.s32 1, %s15
    $region7: #{tpu_custom_call.1} parent=1 // loop_footer_branch
      %14 = sbr.rel target = $region3
    $region8: #{tpu_custom_call.1} parent=1 // loop_exit
      _
    %1692 = vsyncpa [#allocation3], 1
    %s1693 = scalar_lea.sflag [#allocation3], 1
    %1694 = vsyncpa %s1693, 1
    %1695 = vsyncpa [#allocation4], 1
    %s1696 = scalar_lea.sflag [#allocation4], 1
    %1697 = vsyncpa %s1696, 1

</llo_original>
